<compile_context>
chip_gen: v5e
topology: v5e:2x2
jax: 0.10.0
libtpu: 0.0.40
codegen_flags: <defaults>
</compile_context>

<pallas_src>
import functools

import jax
import jax.numpy as jnp
from jax.experimental import pallas as pl
from jax.experimental.pallas import tpu as pltpu

K = 3          # TAGConv default number of propagation hops
LANE = 128     # TPU lane width; padded feature width for every layer
SUB = 8        # TPU sublane width


def _ceil_to(v, m):
    return ((v + m - 1) // m) * m


def _tagconv_horner(a_bf, h, w_ref, b_ref):
    """One TAGConv layer on padded operands.

    a_bf : (Np, Np) bf16 normalized adjacency.
    h    : (Np, LANE) f32 node features (zero-padded).
    w_ref: (LANE, (K+1)*LANE) packed per-hop weights [W0 | W1 | W2 | W3].
    b_ref: (1, LANE) bias.
    """
    # One fat projection matmul: contraction dim = 128, output = 4*128.
    p = jnp.dot(h, w_ref[...], preferred_element_type=jnp.float32)
    # Horner: y = P_K ; y = P_k + A @ y   for k = K-1 .. 0
    y = p[:, K * LANE:(K + 1) * LANE]
    for k in range(K - 1, -1, -1):
        y = p[:, k * LANE:(k + 1) * LANE] + jnp.dot(
            a_bf, y.astype(jnp.bfloat16), preferred_element_type=jnp.float32)
    return y + b_ref[...]  # (1, LANE) broadcasts over nodes


def tagnn_kernel(a_ref, x_ref, w1_ref, b1_ref, w2_ref, b2_ref, w3_ref, b3_ref,
                 o_ref, *, out_c):
    a = a_ref[...]          # bf16 (Np, Np)
    x = x_ref[...]          # f32  (Np, LANE)

    # layer 1: TAGConv -> ReLU -> Dropout(eval: identity)
    h1 = jnp.maximum(_tagconv_horner(a, x, w1_ref, b1_ref), 0.0)
    # layer 2: TAGConv -> ReLU -> Dropout(eval: identity)
    h2 = jnp.maximum(_tagconv_horner(a, h1, w2_ref, b2_ref), 0.0)
    # layer 3: TAGConv
    h3 = _tagconv_horner(a, h2, w3_ref, b3_ref)

    # LogSoftmax over the class axis; padded class columns masked to -inf so
    # they do not contribute.  Output block stays lane-dense (Np, 128).
    col = jax.lax.broadcasted_iota(jnp.int32, h3.shape, 1)
    valid = col < out_c
    h3m = jnp.where(valid, h3, jnp.float32(-1e30))
    m = jnp.max(h3m, axis=1, keepdims=True)
    z = h3m - m
    lse = jnp.log(jnp.sum(jnp.where(valid, jnp.exp(z), 0.0),
                          axis=1, keepdims=True))
    o_ref[...] = z - lse


def _pack_weights(w, b, fin_pad, fout_pad):
    """(K+1, Fin, Fout), (1, Fout) -> (fin_pad, (K+1)*fout_pad), (1, fout_pad)."""
    kp1, fin, fout = w.shape
    w_p = jnp.zeros((kp1, fin_pad, fout_pad), jnp.float32)
    w_p = w_p.at[:, :fin, :fout].set(w)
    w_cat = jnp.concatenate([w_p[k] for k in range(kp1)], axis=1)
    b_p = jnp.zeros((1, fout_pad), jnp.float32).at[:, :fout].set(b)
    return w_cat, b_p


def tagnn_forward(a_hat, x, params):
    """params = [(W1, b1), (W2, b2), (W3, b3)], W_l: (K+1, Fin, Fout)."""
    (w1, b1), (w2, b2), (w3, b3) = params
    n, in_c = x.shape
    out_c = int(w3.shape[-1])
    n_pad = _ceil_to(n, LANE)      # N is both sublane (rows) and lane (A cols)

    # Pad + cast operands in JAX glue.
    a_p = jnp.zeros((n_pad, n_pad), jnp.float32).at[:n, :n].set(a_hat)
    a_p = a_p.astype(jnp.bfloat16)                       # bf16 adjacency
    x_p = jnp.zeros((n_pad, LANE), jnp.float32).at[:n, :in_c].set(x)

    w1c, b1p = _pack_weights(w1, b1, LANE, LANE)
    w2c, b2p = _pack_weights(w2, b2, LANE, LANE)
    w3c, b3p = _pack_weights(w3, b3, LANE, LANE)

    # Whole-graph-resident kernel: check it fits comfortably in VMEM.
    # TODO(synk): for large N, add a row-block grid ('parallel' node axis +
    # 'arbitrary' reduction over A column blocks) instead of full residency.
    resident_bytes = (a_p.size * 2 + x_p.size * 4
                      + 3 * (LANE * (K + 1) * LANE * 4 + LANE * 4)
                      + n_pad * LANE * 4)
    assert resident_bytes < 48 * 1024 * 1024, "graph too large for fused kernel"

    # Advisory cost estimate.
    flops = 0
    for _ in range(3):
        flops += 2 * n_pad * LANE * (K + 1) * LANE      # fused projection
        flops += 2 * K * n_pad * n_pad * LANE           # Horner propagation
    cost = pl.CostEstimate(flops=flops,
                           transcendentals=n_pad * LANE,
                           bytes_accessed=resident_bytes)

    vmem = pl.BlockSpec(memory_space=pltpu.MemorySpace.VMEM)
    out_pad = pl.pallas_call(
        functools.partial(tagnn_kernel, out_c=out_c),
        out_shape=jax.ShapeDtypeStruct((n_pad, LANE), jnp.float32),
        in_specs=[vmem] * 8,
        out_specs=vmem,
        compiler_params=pltpu.CompilerParams(
            vmem_limit_bytes=64 * 1024 * 1024),
        cost_estimate=cost,
    )(a_p, x_p, w1c, b1p, w2c, b2p, w3c, b3p)

    return out_pad[:n, :out_c]


def build_a_hat(edge_index, num_nodes):
    """Dense D^{-1/2} A D^{-1/2} matching PyG gcn_norm(add_self_loops=False)."""
    src, dst = edge_index[0], edge_index[1]
    adj = jnp.zeros((num_nodes, num_nodes), jnp.float32).at[dst, src].add(1.0)
    deg = jnp.sum(adj, axis=1)
    dinv = jnp.where(deg > 0, 1.0 / jnp.sqrt(deg), 0.0)
    return dinv[:, None] * adj * dinv[None, :]


def init_tagconv(key, fin, fout):
    w = jax.random.normal(key, (K + 1, fin, fout), jnp.float32) / jnp.sqrt(fin)
    b = jnp.zeros((1, fout), jnp.float32)
    return w, b


def tagnn_reference(a_hat, x, params):
    """Pure-JAX f32 reference (unfused hop sum) for validation."""
    def conv(a, h, w, b):
        out = h @ w[0]
        hk = h
        for k in range(1, K + 1):
            hk = a @ hk
            out = out + hk @ w[k]
        return out + b

    (w1, b1), (w2, b2), (w3, b3) = params
    h1 = jnp.maximum(conv(a_hat, x, w1, b1), 0.0)
    h2 = jnp.maximum(conv(a_hat, h1, w2, b2), 0.0)
    h3 = conv(a_hat, h2, w3, b3)
    return jax.nn.log_softmax(h3, axis=1)


if __name__ == "__main__":
    # Small, deterministic synthetic graph.
    N = 16
    IN_C, H1, H2, OUT_C = 55, 32, 16, 2   # channels from the module __init__

    key = jax.random.PRNGKey(0)
    kx, k1, k2, k3 = jax.random.split(key, 4)

    x = jax.random.normal(kx, (N, IN_C), jnp.float32)

    # Undirected ring graph: edges i <-> (i+1) % N.
    src = jnp.arange(N, dtype=jnp.int32)
    dst = (src + 1) % N
    edge_index = jnp.stack(
        [jnp.concatenate([src, dst]), jnp.concatenate([dst, src])], axis=0)

    a_hat = build_a_hat(edge_index, N)

    params = [
        init_tagconv(k1, IN_C, H1),
        init_tagconv(k2, H1, H2),
        init_tagconv(k3, H2, OUT_C),
    ]

    out = tagnn_forward(a_hat, x, params)
    out = jax.block_until_ready(out)

    assert out.shape == (N, OUT_C)
    assert bool(jnp.all(jnp.isfinite(out)))
    # log-softmax rows must sum (in prob space) to ~1
    assert bool(jnp.allclose(jnp.sum(jnp.exp(out), axis=1), 1.0, atol=1e-5))
    # validate against the f32 reference (bf16 adjacency -> loose tolerance)
    ref = tagnn_reference(a_hat, x, params)
    assert bool(jnp.allclose(out, ref, atol=1e-1, rtol=5e-2))

    print("KERNEL_OK")
</pallas_src>

<mosaic_0001>
module attributes {stable_mosaic.version = 11 : i64} {
  func.func @tagnn_kernel(%arg0: memref<128x128xbf16, #tpu.memory_space<vmem>>, %arg1: memref<128x128xf32, #tpu.memory_space<vmem>>, %arg2: memref<128x512xf32, #tpu.memory_space<vmem>>, %arg3: memref<1x128xf32, #tpu.memory_space<vmem>>, %arg4: memref<128x512xf32, #tpu.memory_space<vmem>>, %arg5: memref<1x128xf32, #tpu.memory_space<vmem>>, %arg6: memref<128x512xf32, #tpu.memory_space<vmem>>, %arg7: memref<1x128xf32, #tpu.memory_space<vmem>>, %arg8: memref<128x128xf32, #tpu.memory_space<vmem>>) attributes {dimension_semantics = [], scalar_prefetch = 0 : i64, scratch_operands = 0 : i64, tpu.core_type = #tpu.core_type<tc>} {
    %c0 = arith.constant 0 : index
    %c0_0 = arith.constant 0 : index
    %0 = vector.load %arg0[%c0, %c0_0] : memref<128x128xbf16, #tpu.memory_space<vmem>>, vector<128x128xbf16>
    %c0_1 = arith.constant 0 : index
    %c0_2 = arith.constant 0 : index
    %1 = vector.load %arg1[%c0_1, %c0_2] : memref<128x128xf32, #tpu.memory_space<vmem>>, vector<128x128xf32>
    %c0_3 = arith.constant 0 : index
    %c0_4 = arith.constant 0 : index
    %2 = vector.load %arg2[%c0_3, %c0_4] : memref<128x512xf32, #tpu.memory_space<vmem>>, vector<128x512xf32>
    %cst = arith.constant dense<0.000000e+00> : vector<128x512xf32>
    %3 = tpu.matmul %1, %2, %cst {dimension_numbers = #tpu.dot_dimension_numbers<[1], [0], [0], [1], [0, 0, 1, 1], [], []>} : vector<128x128xf32>, vector<128x512xf32>, vector<128x512xf32> -> vector<128x512xf32>
    %4 = vector.extract_strided_slice %3 {offsets = [0, 384], sizes = [128, 128], strides = [1, 1]} : vector<128x512xf32> to vector<128x128xf32>
    %5 = vector.extract_strided_slice %3 {offsets = [0, 256], sizes = [128, 128], strides = [1, 1]} : vector<128x512xf32> to vector<128x128xf32>
    %6 = arith.truncf %4 : vector<128x128xf32> to vector<128x128xbf16>
    %cst_5 = arith.constant dense<0.000000e+00> : vector<128x128xf32>
    %7 = tpu.matmul %0, %6, %cst_5 {dimension_numbers = #tpu.dot_dimension_numbers<[1], [0], [0], [1], [0, 0, 1, 1], [], []>} : vector<128x128xbf16>, vector<128x128xbf16>, vector<128x128xf32> -> vector<128x128xf32>
    %8 = arith.addf %5, %7 : vector<128x128xf32>
    %9 = vector.extract_strided_slice %3 {offsets = [0, 128], sizes = [128, 128], strides = [1, 1]} : vector<128x512xf32> to vector<128x128xf32>
    %10 = arith.truncf %8 : vector<128x128xf32> to vector<128x128xbf16>
    %cst_6 = arith.constant dense<0.000000e+00> : vector<128x128xf32>
    %11 = tpu.matmul %0, %10, %cst_6 {dimension_numbers = #tpu.dot_dimension_numbers<[1], [0], [0], [1], [0, 0, 1, 1], [], []>} : vector<128x128xbf16>, vector<128x128xbf16>, vector<128x128xf32> -> vector<128x128xf32>
    %12 = arith.addf %9, %11 : vector<128x128xf32>
    %13 = vector.extract_strided_slice %3 {offsets = [0, 0], sizes = [128, 128], strides = [1, 1]} : vector<128x512xf32> to vector<128x128xf32>
    %14 = arith.truncf %12 : vector<128x128xf32> to vector<128x128xbf16>
    %cst_7 = arith.constant dense<0.000000e+00> : vector<128x128xf32>
    %15 = tpu.matmul %0, %14, %cst_7 {dimension_numbers = #tpu.dot_dimension_numbers<[1], [0], [0], [1], [0, 0, 1, 1], [], []>} : vector<128x128xbf16>, vector<128x128xbf16>, vector<128x128xf32> -> vector<128x128xf32>
    %16 = arith.addf %13, %15 : vector<128x128xf32>
    %c0_8 = arith.constant 0 : index
    %c0_9 = arith.constant 0 : index
    %17 = vector.load %arg3[%c0_8, %c0_9] : memref<1x128xf32, #tpu.memory_space<vmem>>, vector<1x128xf32>
    %18 = vector.broadcast %17 : vector<1x128xf32> to vector<128x128xf32>
    %19 = arith.addf %16, %18 : vector<128x128xf32>
    %cst_10 = arith.constant 0.000000e+00 : f32
    %20 = vector.broadcast %cst_10 : f32 to vector<128x128xf32>
    %21 = arith.maximumf %19, %20 : vector<128x128xf32>
    %c0_11 = arith.constant 0 : index
    %c0_12 = arith.constant 0 : index
    %22 = vector.load %arg4[%c0_11, %c0_12] : memref<128x512xf32, #tpu.memory_space<vmem>>, vector<128x512xf32>
    %cst_13 = arith.constant dense<0.000000e+00> : vector<128x512xf32>
    %23 = tpu.matmul %21, %22, %cst_13 {dimension_numbers = #tpu.dot_dimension_numbers<[1], [0], [0], [1], [0, 0, 1, 1], [], []>} : vector<128x128xf32>, vector<128x512xf32>, vector<128x512xf32> -> vector<128x512xf32>
    %24 = vector.extract_strided_slice %23 {offsets = [0, 384], sizes = [128, 128], strides = [1, 1]} : vector<128x512xf32> to vector<128x128xf32>
    %25 = vector.extract_strided_slice %23 {offsets = [0, 256], sizes = [128, 128], strides = [1, 1]} : vector<128x512xf32> to vector<128x128xf32>
    %26 = arith.truncf %24 : vector<128x128xf32> to vector<128x128xbf16>
    %cst_14 = arith.constant dense<0.000000e+00> : vector<128x128xf32>
    %27 = tpu.matmul %0, %26, %cst_14 {dimension_numbers = #tpu.dot_dimension_numbers<[1], [0], [0], [1], [0, 0, 1, 1], [], []>} : vector<128x128xbf16>, vector<128x128xbf16>, vector<128x128xf32> -> vector<128x128xf32>
    %28 = arith.addf %25, %27 : vector<128x128xf32>
    %29 = vector.extract_strided_slice %23 {offsets = [0, 128], sizes = [128, 128], strides = [1, 1]} : vector<128x512xf32> to vector<128x128xf32>
    %30 = arith.truncf %28 : vector<128x128xf32> to vector<128x128xbf16>
    %cst_15 = arith.constant dense<0.000000e+00> : vector<128x128xf32>
    %31 = tpu.matmul %0, %30, %cst_15 {dimension_numbers = #tpu.dot_dimension_numbers<[1], [0], [0], [1], [0, 0, 1, 1], [], []>} : vector<128x128xbf16>, vector<128x128xbf16>, vector<128x128xf32> -> vector<128x128xf32>
    %32 = arith.addf %29, %31 : vector<128x128xf32>
    %33 = vector.extract_strided_slice %23 {offsets = [0, 0], sizes = [128, 128], strides = [1, 1]} : vector<128x512xf32> to vector<128x128xf32>
    %34 = arith.truncf %32 : vector<128x128xf32> to vector<128x128xbf16>
    %cst_16 = arith.constant dense<0.000000e+00> : vector<128x128xf32>
    %35 = tpu.matmul %0, %34, %cst_16 {dimension_numbers = #tpu.dot_dimension_numbers<[1], [0], [0], [1], [0, 0, 1, 1], [], []>} : vector<128x128xbf16>, vector<128x128xbf16>, vector<128x128xf32> -> vector<128x128xf32>
    %36 = arith.addf %33, %35 : vector<128x128xf32>
    %c0_17 = arith.constant 0 : index
    %c0_18 = arith.constant 0 : index
    %37 = vector.load %arg5[%c0_17, %c0_18] : memref<1x128xf32, #tpu.memory_space<vmem>>, vector<1x128xf32>
    %38 = vector.broadcast %37 : vector<1x128xf32> to vector<128x128xf32>
    %39 = arith.addf %36, %38 : vector<128x128xf32>
    %cst_19 = arith.constant 0.000000e+00 : f32
    %40 = vector.broadcast %cst_19 : f32 to vector<128x128xf32>
    %41 = arith.maximumf %39, %40 : vector<128x128xf32>
    %c0_20 = arith.constant 0 : index
    %c0_21 = arith.constant 0 : index
    %42 = vector.load %arg6[%c0_20, %c0_21] : memref<128x512xf32, #tpu.memory_space<vmem>>, vector<128x512xf32>
    %cst_22 = arith.constant dense<0.000000e+00> : vector<128x512xf32>
    %43 = tpu.matmul %41, %42, %cst_22 {dimension_numbers = #tpu.dot_dimension_numbers<[1], [0], [0], [1], [0, 0, 1, 1], [], []>} : vector<128x128xf32>, vector<128x512xf32>, vector<128x512xf32> -> vector<128x512xf32>
    %44 = vector.extract_strided_slice %43 {offsets = [0, 384], sizes = [128, 128], strides = [1, 1]} : vector<128x512xf32> to vector<128x128xf32>
    %45 = vector.extract_strided_slice %43 {offsets = [0, 256], sizes = [128, 128], strides = [1, 1]} : vector<128x512xf32> to vector<128x128xf32>
    %46 = arith.truncf %44 : vector<128x128xf32> to vector<128x128xbf16>
    %cst_23 = arith.constant dense<0.000000e+00> : vector<128x128xf32>
    %47 = tpu.matmul %0, %46, %cst_23 {dimension_numbers = #tpu.dot_dimension_numbers<[1], [0], [0], [1], [0, 0, 1, 1], [], []>} : vector<128x128xbf16>, vector<128x128xbf16>, vector<128x128xf32> -> vector<128x128xf32>
    %48 = arith.addf %45, %47 : vector<128x128xf32>
    %49 = vector.extract_strided_slice %43 {offsets = [0, 128], sizes = [128, 128], strides = [1, 1]} : vector<128x512xf32> to vector<128x128xf32>
    %50 = arith.truncf %48 : vector<128x128xf32> to vector<128x128xbf16>
    %cst_24 = arith.constant dense<0.000000e+00> : vector<128x128xf32>
    %51 = tpu.matmul %0, %50, %cst_24 {dimension_numbers = #tpu.dot_dimension_numbers<[1], [0], [0], [1], [0, 0, 1, 1], [], []>} : vector<128x128xbf16>, vector<128x128xbf16>, vector<128x128xf32> -> vector<128x128xf32>
    %52 = arith.addf %49, %51 : vector<128x128xf32>
    %53 = vector.extract_strided_slice %43 {offsets = [0, 0], sizes = [128, 128], strides = [1, 1]} : vector<128x512xf32> to vector<128x128xf32>
    %54 = arith.truncf %52 : vector<128x128xf32> to vector<128x128xbf16>
    %cst_25 = arith.constant dense<0.000000e+00> : vector<128x128xf32>
    %55 = tpu.matmul %0, %54, %cst_25 {dimension_numbers = #tpu.dot_dimension_numbers<[1], [0], [0], [1], [0, 0, 1, 1], [], []>} : vector<128x128xbf16>, vector<128x128xbf16>, vector<128x128xf32> -> vector<128x128xf32>
    %56 = arith.addf %53, %55 : vector<128x128xf32>
    %c0_26 = arith.constant 0 : index
    %c0_27 = arith.constant 0 : index
    %57 = vector.load %arg7[%c0_26, %c0_27] : memref<1x128xf32, #tpu.memory_space<vmem>>, vector<1x128xf32>
    %58 = vector.broadcast %57 : vector<1x128xf32> to vector<128x128xf32>
    %59 = arith.addf %56, %58 : vector<128x128xf32>
    %60 = tpu.iota {dimensions = array<i32: 1>} : vector<128x128xi32>
    %c2_i32 = arith.constant 2 : i32
    %61 = vector.broadcast %c2_i32 : i32 to vector<128x128xi32>
    %62 = arith.cmpi slt, %60, %61 : vector<128x128xi32>
    %cst_28 = arith.constant -1.000000e+30 : f32
    %63 = vector.broadcast %cst_28 : f32 to vector<128x128xf32>
    %64 = arith.select %62, %59, %63 : vector<128x128xi1>, vector<128x128xf32>
    %cst_29 = arith.constant dense<0xFF800000> : vector<128xf32>
    %65 = vector.multi_reduction <maximumf>, %64, %cst_29 [1] : vector<128x128xf32> to vector<128xf32>
    %66 = vector.shape_cast %65 : vector<128xf32> to vector<128x1xf32>
    %67 = vector.broadcast %66 : vector<128x1xf32> to vector<128x128xf32>
    %68 = arith.subf %64, %67 : vector<128x128xf32>
    %69 = math.exp %68 : vector<128x128xf32>
    %cst_30 = arith.constant 0.000000e+00 : f32
    %70 = vector.broadcast %cst_30 : f32 to vector<128x128xf32>
    %71 = arith.select %62, %69, %70 : vector<128x128xi1>, vector<128x128xf32>
    %cst_31 = arith.constant dense<0.000000e+00> : vector<128xf32>
    %72 = vector.multi_reduction <add>, %71, %cst_31 [1] : vector<128x128xf32> to vector<128xf32>
    %73 = vector.shape_cast %72 : vector<128xf32> to vector<128x1xf32>
    %74 = math.log %73 : vector<128x1xf32>
    %75 = vector.broadcast %74 : vector<128x1xf32> to vector<128x128xf32>
    %76 = arith.subf %68, %75 : vector<128x128xf32>
    %c0_32 = arith.constant 0 : index
    %c0_33 = arith.constant 0 : index
    %77 = vector.load %arg8[%c0_32, %c0_33] : memref<128x128xf32, #tpu.memory_space<vmem>>, vector<128x128xf32>
    tpu.vector_store %arg8[%c0_32, %c0_33], %76 {strides = array<i32>} : memref<128x128xf32, #tpu.memory_space<vmem>>, vector<128x128xf32>,
    return
  }
}

</mosaic_0001>

<llo_original>
// kernel: tpu_custom_call.1
$region0: #{tpu_custom_call.1}
  #allocation0 [shape = 'u32[]', space=smem, size = 0x4, offset = 0x4, fixed_abs, tag = 'smem constant byte address 0x4 - core index']
  #allocation1 [shape = 'u32[72,128]{1,0:T(1,128)}', space=vmem, size = 0x9000, scoped, tag = 'internal scratch']
  %s0 = inlined_call_operand.hbm [shape: bf16[128,128], index: 0, kind: input, shape index: {}]
  %s1 = inlined_call_operand.hbm [shape: f32[128,128], index: 1, kind: input, shape index: {}]
  %s2 = inlined_call_operand.hbm [shape: f32[128,512], index: 2, kind: input, shape index: {}]
  %s3 = inlined_call_operand.vmem [shape: f32[1,128], index: 3, kind: input, shape index: {}]
  %s4 = inlined_call_operand.hbm [shape: f32[128,512], index: 4, kind: input, shape index: {}]
  %s5 = inlined_call_operand.vmem [shape: f32[1,128], index: 5, kind: input, shape index: {}]
  %s6 = inlined_call_operand.hbm [shape: f32[128,512], index: 6, kind: input, shape index: {}]
  %s7 = inlined_call_operand.vmem [shape: f32[1,128], index: 7, kind: input, shape index: {}]
  %s8 = inlined_call_operand.hbm [shape: f32[128,128], index: 8, kind: output, shape index: {}]
  %s9 = sld [smem:[#allocation0]]
  $region62: #{tpu_custom_call.1} parent=0
    _
  %s11 = ssub.s32 1, %s9
  %s12 = scalar_select 0, %s11, %s9
  $region1: #{tpu_custom_call.1} parent=0
    #allocation2 [shape = 'u8[32768]{0}', space=vmem, size = 0x8000, scoped, tag = 'input window, operand 0, single buffered']
    #allocation3 [shape = 's32[1]{0}', space=sflag, size = 0x4, scoped, tag = 'scoped memory for tpu_custom_call.1']
    #allocation4 [shape = 's32[1]{0}', space=sflag, size = 0x4, scoped, tag = 'scoped memory for tpu_custom_call.1']
    #allocation5 [shape = 'u8[65536]{0}', space=vmem, size = 0x10000, scoped, tag = 'input window, operand 1, single buffered']
    #allocation6 [shape = 's32[1]{0}', space=sflag, size = 0x4, scoped, tag = 'scoped memory for tpu_custom_call.1']
    #allocation7 [shape = 'u8[262144]{0}', space=vmem, size = 0x40000, scoped, tag = 'input window, operand 2, single buffered']
    #allocation8 [shape = 'u8[262144]{0}', space=vmem, size = 0x40000, scoped, tag = 'input window, operand 4, single buffered']
    #allocation9 [shape = 's32[1]{0}', space=sflag, size = 0x4, scoped, tag = 'scoped memory for tpu_custom_call.1']
    #allocation10 [shape = 'u8[262144]{0}', space=vmem, size = 0x40000, scoped, tag = 'input window, operand 6, single buffered']
    #allocation11 [shape = 'u8[65536]{0}', space=vmem, size = 0x10000, scoped, tag = 'output window, operand 0, single buffered']
    %13 = vsyncpa [#allocation3], 0
    %14 = vsyncpa [#allocation6], 0
    %15 = vsyncpa [#allocation9], 0
    %16 = vsyncpa [#allocation4], 0
    // Predicated region
    $region2: #{tpu_custom_call.1} parent=1 // pred_check
      _
    $region3: #{tpu_custom_call.1} parent=1 // pred_check_branch
      %18 = sbr.rel (0) target = $region5
    $region4: #{tpu_custom_call.1} parent=1 // pred_region
      %20 = vsyncadd [#allocation3], 0
      %s21 = sshll.u32 %s0, 4
      %s22 = int_to_ptr.hbm [resolvable:$true] %s21
      %s23 = sshll.u32 [#allocation2], 4
      %s24 = int_to_ptr.vmem [resolvable:$true] %s23
      %29 = dma.hbm_to_vmem [thread:$0]  %s22, 1024, %s24, [#allocation3], 64, 64, 4
    $region5: #{tpu_custom_call.1} parent=1 // pred_fallthru
      _
    // Predicated region
    $region6: #{tpu_custom_call.1} parent=1 // pred_check
      _
    $region7: #{tpu_custom_call.1} parent=1 // pred_check_branch
      %31 = sbr.rel (0) target = $region9
    $region8: #{tpu_custom_call.1} parent=1 // pred_region
      %33 = vsyncadd [#allocation6], 0
      %s34 = sshll.u32 %s1, 4
      %s35 = int_to_ptr.hbm [resolvable:$true] %s34
      %s36 = sshll.u32 [#allocation5], 4
      %s37 = int_to_ptr.vmem [resolvable:$true] %s36
      %42 = dma.hbm_to_vmem [thread:$0]  %s35, 2048, %s37, [#allocation6], 128, 128, 8
    $region9: #{tpu_custom_call.1} parent=1 // pred_fallthru
      _
    // Predicated region
    $region10: #{tpu_custom_call.1} parent=1 // pred_check
      _
    $region11: #{tpu_custom_call.1} parent=1 // pred_check_branch
      %44 = sbr.rel (0) target = $region13
    $region12: #{tpu_custom_call.1} parent=1 // pred_region
      %46 = vsyncadd [#allocation6], 0
      %s47 = sshll.u32 %s2, 4
      %s48 = int_to_ptr.hbm [resolvable:$true] %s47
      %s49 = sshll.u32 [#allocation7], 4
      %s50 = int_to_ptr.vmem [resolvable:$true] %s49
      %55 = dma.hbm_to_vmem [thread:$0]  %s48, 8192, %s50, [#allocation6], 512, 512, 32
    $region13: #{tpu_custom_call.1} parent=1 // pred_fallthru
      _
    // Predicated region
    $region14: #{tpu_custom_call.1} parent=1 // pred_check
      _
    $region15: #{tpu_custom_call.1} parent=1 // pred_check_branch
      %57 = sbr.rel (0) target = $region17
    $region16: #{tpu_custom_call.1} parent=1 // pred_region
      _
    $region17: #{tpu_custom_call.1} parent=1 // pred_fallthru
      _
    // Predicated region
    $region18: #{tpu_custom_call.1} parent=1 // pred_check
      _
    $region19: #{tpu_custom_call.1} parent=1 // pred_check_branch
      %59 = sbr.rel (0) target = $region21
    $region20: #{tpu_custom_call.1} parent=1 // pred_region
      %61 = vsyncadd [#allocation9], 0
      %s62 = sshll.u32 %s4, 4
      %s63 = int_to_ptr.hbm [resolvable:$true] %s62
      %s64 = sshll.u32 [#allocation8], 4
      %s65 = int_to_ptr.vmem [resolvable:$true] %s64
      %70 = dma.hbm_to_vmem [thread:$0]  %s63, 8192, %s65, [#allocation9], 512, 512, 32
    $region21: #{tpu_custom_call.1} parent=1 // pred_fallthru
      _
    // Predicated region
    $region22: #{tpu_custom_call.1} parent=1 // pred_check
      _
    $region23: #{tpu_custom_call.1} parent=1 // pred_check_branch
      %72 = sbr.rel (0) target = $region25
    $region24: #{tpu_custom_call.1} parent=1 // pred_region
      _
    $region25: #{tpu_custom_call.1} parent=1 // pred_fallthru
      _
    // Predicated region
    $region26: #{tpu_custom_call.1} parent=1 // pred_check
      _
    $region27: #{tpu_custom_call.1} parent=1 // pred_check_branch
      %74 = sbr.rel (0) target = $region29
    $region28: #{tpu_custom_call.1} parent=1 // pred_region
      %76 = vsyncadd [#allocation9], 0
      %s77 = sshll.u32 %s6, 4
      %s78 = int_to_ptr.hbm [resolvable:$true] %s77
      %s79 = sshll.u32 [#allocation10], 4
      %s80 = int_to_ptr.vmem [resolvable:$true] %s79
      %85 = dma.hbm_to_vmem [thread:$0]  %s78, 8192, %s80, [#allocation9], 512, 512, 32
    $region29: #{tpu_custom_call.1} parent=1 // pred_fallthru
      _
    // Predicated region
    $region30: #{tpu_custom_call.1} parent=1 // pred_check
      _
    $region31: #{tpu_custom_call.1} parent=1 // pred_check_branch
      %87 = sbr.rel (0) target = $region33
    $region32: #{tpu_custom_call.1} parent=1 // pred_region
      _
    $region33: #{tpu_custom_call.1} parent=1 // pred_fallthru
      _
    // Predicated region
    $region34: #{tpu_custom_call.1} parent=1 // pred_check
      _
    $region35: #{tpu_custom_call.1} parent=1 // pred_check_branch
      %89 = sbr.rel (0) target = $region37
    $region36: #{tpu_custom_call.1} parent=1 // pred_region
      %91 = dma.done [#allocation3], 1024
    $region37: #{tpu_custom_call.1} parent=1 // pred_fallthru
      _
    // Predicated region
    $region38: #{tpu_custom_call.1} parent=1 // pred_check
      _
    $region39: #{tpu_custom_call.1} parent=1 // pred_check_branch
      %93 = sbr.rel (0) target = $region41
    $region40: #{tpu_custom_call.1} parent=1 // pred_region
      %95 = dma.done [#allocation6], 2048
    $region41: #{tpu_custom_call.1} parent=1 // pred_fallthru
      _
    // Predicated region
    $region42: #{tpu_custom_call.1} parent=1 // pred_check
      _
    $region43: #{tpu_custom_call.1} parent=1 // pred_check_branch
      %97 = sbr.rel (0) target = $region45
    $region44: #{tpu_custom_call.1} parent=1 // pred_region
      %99 = dma.done [#allocation6], 8192
    $region45: #{tpu_custom_call.1} parent=1 // pred_fallthru
      _
    // Predicated region
    $region46: #{tpu_custom_call.1} parent=1 // pred_check
      _
    $region47: #{tpu_custom_call.1} parent=1 // pred_check_branch
      %101 = sbr.rel (0) target = $region49
    $region48: #{tpu_custom_call.1} parent=1 // pred_region
      %103 = dma.done [#allocation9], 8192
    $region49: #{tpu_custom_call.1} parent=1 // pred_fallthru
      _
    // Predicated region
    $region50: #{tpu_custom_call.1} parent=1 // pred_check
      _
    $region51: #{tpu_custom_call.1} parent=1 // pred_check_branch
      %105 = sbr.rel (0) target = $region53
    $region52: #{tpu_custom_call.1} parent=1 // pred_region
      %107 = dma.done [#allocation9], 8192
    $region53: #{tpu_custom_call.1} parent=1 // pred_fallthru
      _
    %v108 = vld [vmem:[#allocation2] sm:$0xf]
    %v109 = vld [vmem:[#allocation2 + $0x4] sm:$0xf]
    %v110 = vld [vmem:[#allocation2 + $0x8] sm:$0xf]
    %v111 = vld [vmem:[#allocation2 + $0xc] sm:$0xf]
    %v112 = vld [vmem:[#allocation2 + $0x10] sm:$0xf]
    %v113 = vld [vmem:[#allocation2 + $0x14] sm:$0xf]
    %v114 = vld [vmem:[#allocation2 + $0x18] sm:$0xf]
    %v115 = vld [vmem:[#allocation2 + $0x1c] sm:$0xf]
    %v116 = vld [vmem:[#allocation2 + $0x20] sm:$0xf]
    %v117 = vld [vmem:[#allocation2 + $0x24] sm:$0xf]
    %v118 = vld [vmem:[#allocation2 + $0x28] sm:$0xf]
    %v119 = vld [vmem:[#allocation2 + $0x2c] sm:$0xf]
    %v120 = vld [vmem:[#allocation2 + $0x30] sm:$0xf]
    %v121 = vld [vmem:[#allocation2 + $0x34] sm:$0xf]
    %v122 = vld [vmem:[#allocation2 + $0x38] sm:$0xf]
    %v123 = vld [vmem:[#allocation2 + $0x3c] sm:$0xf]
    %v124 = vld [vmem:[#allocation5] sm:$0xff]
    %v125 = vld [vmem:[#allocation5 + $0x8] sm:$0xff]
    %v126 = vld [vmem:[#allocation5 + $0x10] sm:$0xff]
    %v127 = vld [vmem:[#allocation5 + $0x18] sm:$0xff]
    %v128 = vld [vmem:[#allocation5 + $0x20] sm:$0xff]
    %v129 = vld [vmem:[#allocation5 + $0x28] sm:$0xff]
    %v130 = vld [vmem:[#allocation5 + $0x30] sm:$0xff]
    %v131 = vld [vmem:[#allocation5 + $0x38] sm:$0xff]
    %v132 = vld [vmem:[#allocation5 + $0x40] sm:$0xff]
    %v133 = vld [vmem:[#allocation5 + $0x48] sm:$0xff]
    %v134 = vld [vmem:[#allocation5 + $0x50] sm:$0xff]
    %v135 = vld [vmem:[#allocation5 + $0x58] sm:$0xff]
    %v136 = vld [vmem:[#allocation5 + $0x60] sm:$0xff]
    %v137 = vld [vmem:[#allocation5 + $0x68] sm:$0xff]
    %v138 = vld [vmem:[#allocation5 + $0x70] sm:$0xff]
    %v139 = vld [vmem:[#allocation5 + $0x78] sm:$0xff]
    %v140 = vld [vmem:[#allocation7] sm:$0xff]
    %v141 = vld [vmem:[#allocation7 + $0x8] sm:$0xff]
    %v142 = vld [vmem:[#allocation7 + $0x10] sm:$0xff]
    %v143 = vld [vmem:[#allocation7 + $0x18] sm:$0xff]
    %v144 = vld [vmem:[#allocation7 + $0x20] sm:$0xff]
    %v145 = vld [vmem:[#allocation7 + $0x28] sm:$0xff]
    %v146 = vld [vmem:[#allocation7 + $0x30] sm:$0xff]
    %v147 = vld [vmem:[#allocation7 + $0x38] sm:$0xff]
    %v148 = vld [vmem:[#allocation7 + $0x40] sm:$0xff]
    %v149 = vld [vmem:[#allocation7 + $0x48] sm:$0xff]
    %v150 = vld [vmem:[#allocation7 + $0x50] sm:$0xff]
    %v151 = vld [vmem:[#allocation7 + $0x58] sm:$0xff]
    %v152 = vld [vmem:[#allocation7 + $0x60] sm:$0xff]
    %v153 = vld [vmem:[#allocation7 + $0x68] sm:$0xff]
    %v154 = vld [vmem:[#allocation7 + $0x70] sm:$0xff]
    %v155 = vld [vmem:[#allocation7 + $0x78] sm:$0xff]
    %v156 = vld [vmem:[#allocation7 + $0x80] sm:$0xff]
    %v157 = vld [vmem:[#allocation7 + $0x88] sm:$0xff]
    %v158 = vld [vmem:[#allocation7 + $0x90] sm:$0xff]
    %v159 = vld [vmem:[#allocation7 + $0x98] sm:$0xff]
    %v160 = vld [vmem:[#allocation7 + $0xa0] sm:$0xff]
    %v161 = vld [vmem:[#allocation7 + $0xa8] sm:$0xff]
    %v162 = vld [vmem:[#allocation7 + $0xb0] sm:$0xff]
    %v163 = vld [vmem:[#allocation7 + $0xb8] sm:$0xff]
    %v164 = vld [vmem:[#allocation7 + $0xc0] sm:$0xff]
    %v165 = vld [vmem:[#allocation7 + $0xc8] sm:$0xff]
    %v166 = vld [vmem:[#allocation7 + $0xd0] sm:$0xff]
    %v167 = vld [vmem:[#allocation7 + $0xd8] sm:$0xff]
    %v168 = vld [vmem:[#allocation7 + $0xe0] sm:$0xff]
    %v169 = vld [vmem:[#allocation7 + $0xe8] sm:$0xff]
    %v170 = vld [vmem:[#allocation7 + $0xf0] sm:$0xff]
    %v171 = vld [vmem:[#allocation7 + $0xf8] sm:$0xff]
    %v172 = vld [vmem:[#allocation7 + $0x100] sm:$0xff]
    %v173 = vld [vmem:[#allocation7 + $0x108] sm:$0xff]
    %v174 = vld [vmem:[#allocation7 + $0x110] sm:$0xff]
    %v175 = vld [vmem:[#allocation7 + $0x118] sm:$0xff]
    %v176 = vld [vmem:[#allocation7 + $0x120] sm:$0xff]
    %v177 = vld [vmem:[#allocation7 + $0x128] sm:$0xff]
    %v178 = vld [vmem:[#allocation7 + $0x130] sm:$0xff]
    %v179 = vld [vmem:[#allocation7 + $0x138] sm:$0xff]
    %v180 = vld [vmem:[#allocation7 + $0x140] sm:$0xff]
    %v181 = vld [vmem:[#allocation7 + $0x148] sm:$0xff]
    %v182 = vld [vmem:[#allocation7 + $0x150] sm:$0xff]
    %v183 = vld [vmem:[#allocation7 + $0x158] sm:$0xff]
    %v184 = vld [vmem:[#allocation7 + $0x160] sm:$0xff]
    %v185 = vld [vmem:[#allocation7 + $0x168] sm:$0xff]
    %v186 = vld [vmem:[#allocation7 + $0x170] sm:$0xff]
    %v187 = vld [vmem:[#allocation7 + $0x178] sm:$0xff]
    %v188 = vld [vmem:[#allocation7 + $0x180] sm:$0xff]
    %v189 = vld [vmem:[#allocation7 + $0x188] sm:$0xff]
    %v190 = vld [vmem:[#allocation7 + $0x190] sm:$0xff]
    %v191 = vld [vmem:[#allocation7 + $0x198] sm:$0xff]
    %v192 = vld [vmem:[#allocation7 + $0x1a0] sm:$0xff]
    %v193 = vld [vmem:[#allocation7 + $0x1a8] sm:$0xff]
    %v194 = vld [vmem:[#allocation7 + $0x1b0] sm:$0xff]
    %v195 = vld [vmem:[#allocation7 + $0x1b8] sm:$0xff]
    %v196 = vld [vmem:[#allocation7 + $0x1c0] sm:$0xff]
    %v197 = vld [vmem:[#allocation7 + $0x1c8] sm:$0xff]
    %v198 = vld [vmem:[#allocation7 + $0x1d0] sm:$0xff]
    %v199 = vld [vmem:[#allocation7 + $0x1d8] sm:$0xff]
    %v200 = vld [vmem:[#allocation7 + $0x1e0] sm:$0xff]
    %v201 = vld [vmem:[#allocation7 + $0x1e8] sm:$0xff]
    %v202 = vld [vmem:[#allocation7 + $0x1f0] sm:$0xff]
    %v203 = vld [vmem:[#allocation7 + $0x1f8] sm:$0xff]
    %204 = vmatpush.msra.mxu0 %v200
    %205 = vmatpush.msra.mxu0 %v196
    %206 = vmatpush.msra.mxu0 %v192
    %207 = vmatpush.msra.mxu0 %v188
    %208 = vmatpush.msra.mxu0 %v184
    %209 = vmatpush.msra.mxu0 %v180
    %210 = vmatpush.msra.mxu0 %v176
    %211 = vmatpush.msra.mxu0 %v172
    %212 = vmatpush.msra.mxu0 %v168
    %213 = vmatpush.msra.mxu0 %v164
    %214 = vmatpush.msra.mxu0 %v160
    %215 = vmatpush.msra.mxu0 %v156
    %216 = vmatpush.msra.mxu0 %v152
    %217 = vmatpush.msra.mxu0 %v148
    %218 = vmatpush.msra.mxu0 %v144
    %219 = vmatpush.msra.mxu0 %v140
    %220 = vmatmul.f32.gmra.mxu0 %v124
    %v221 = vpop.f32.mrf.mxu0
    %v222 = vadd.f32 0.0, %v221
    %223 = vmatmul.f32.gmra.mxu0 %v125
    %v224 = vpop.f32.mrf.mxu0
    %v225 = vadd.f32 0.0, %v224
    %226 = vmatmul.f32.gmra.mxu0 %v126
    %v227 = vpop.f32.mrf.mxu0
    %v228 = vadd.f32 0.0, %v227
    %229 = vmatmul.f32.gmra.mxu0 %v127
    %v230 = vpop.f32.mrf.mxu0
    %v231 = vadd.f32 0.0, %v230
    %232 = vmatmul.f32.gmra.mxu0 %v128
    %v233 = vpop.f32.mrf.mxu0
    %v234 = vadd.f32 0.0, %v233
    %235 = vmatmul.f32.gmra.mxu0 %v129
    %v236 = vpop.f32.mrf.mxu0
    %v237 = vadd.f32 0.0, %v236
    %238 = vmatmul.f32.gmra.mxu0 %v130
    %v239 = vpop.f32.mrf.mxu0
    %v240 = vadd.f32 0.0, %v239
    %241 = vmatmul.f32.gmra.mxu0 %v131
    %v242 = vpop.f32.mrf.mxu0
    %v243 = vadd.f32 0.0, %v242
    %244 = vmatmul.f32.gmra.mxu0 %v132
    %v245 = vpop.f32.mrf.mxu0
    %v246 = vadd.f32 0.0, %v245
    %247 = vmatmul.f32.gmra.mxu0 %v133
    %v248 = vpop.f32.mrf.mxu0
    %v249 = vadd.f32 0.0, %v248
    %250 = vmatmul.f32.gmra.mxu0 %v134
    %v251 = vpop.f32.mrf.mxu0
    %v252 = vadd.f32 0.0, %v251
    %253 = vmatmul.f32.gmra.mxu0 %v135
    %v254 = vpop.f32.mrf.mxu0
    %v255 = vadd.f32 0.0, %v254
    %256 = vmatmul.f32.gmra.mxu0 %v136
    %v257 = vpop.f32.mrf.mxu0
    %v258 = vadd.f32 0.0, %v257
    %259 = vmatmul.f32.gmra.mxu0 %v137
    %v260 = vpop.f32.mrf.mxu0
    %v261 = vadd.f32 0.0, %v260
    %262 = vmatmul.f32.gmra.mxu0 %v138
    %v263 = vpop.f32.mrf.mxu0
    %v264 = vadd.f32 0.0, %v263
    %265 = vmatmul.f32.gmra.mxu0 %v139
    %v266 = vpop.f32.mrf.mxu0
    %v267 = vadd.f32 0.0, %v266
    %268 = vdwg.mxu0
    %269 = vmatpush.msra.mxu0 %v201
    %270 = vmatpush.msra.mxu0 %v197
    %271 = vmatpush.msra.mxu0 %v193
    %272 = vmatpush.msra.mxu0 %v189
    %273 = vmatpush.msra.mxu0 %v185
    %274 = vmatpush.msra.mxu0 %v181
    %275 = vmatpush.msra.mxu0 %v177
    %276 = vmatpush.msra.mxu0 %v173
    %277 = vmatpush.msra.mxu0 %v169
    %278 = vmatpush.msra.mxu0 %v165
    %279 = vmatpush.msra.mxu0 %v161
    %280 = vmatpush.msra.mxu0 %v157
    %281 = vmatpush.msra.mxu0 %v153
    %282 = vmatpush.msra.mxu0 %v149
    %283 = vmatpush.msra.mxu0 %v145
    %284 = vmatpush.msra.mxu0 %v141
    %285 = vmatmul.f32.gmra.mxu0 %v124
    %v286 = vpop.f32.mrf.mxu0
    %v287 = vadd.f32 0.0, %v286
    %288 = vmatmul.f32.gmra.mxu0 %v125
    %v289 = vpop.f32.mrf.mxu0
    %v290 = vadd.f32 0.0, %v289
    %291 = vmatmul.f32.gmra.mxu0 %v126
    %v292 = vpop.f32.mrf.mxu0
    %v293 = vadd.f32 0.0, %v292
    %294 = vmatmul.f32.gmra.mxu0 %v127
    %v295 = vpop.f32.mrf.mxu0
    %v296 = vadd.f32 0.0, %v295
    %297 = vmatmul.f32.gmra.mxu0 %v128
    %v298 = vpop.f32.mrf.mxu0
    %v299 = vadd.f32 0.0, %v298
    %300 = vmatmul.f32.gmra.mxu0 %v129
    %v301 = vpop.f32.mrf.mxu0
    %v302 = vadd.f32 0.0, %v301
    %303 = vmatmul.f32.gmra.mxu0 %v130
    %v304 = vpop.f32.mrf.mxu0
    %v305 = vadd.f32 0.0, %v304
    %306 = vmatmul.f32.gmra.mxu0 %v131
    %v307 = vpop.f32.mrf.mxu0
    %v308 = vadd.f32 0.0, %v307
    %309 = vmatmul.f32.gmra.mxu0 %v132
    %v310 = vpop.f32.mrf.mxu0
    %v311 = vadd.f32 0.0, %v310
    %312 = vmatmul.f32.gmra.mxu0 %v133
    %v313 = vpop.f32.mrf.mxu0
    %v314 = vadd.f32 0.0, %v313
    %315 = vmatmul.f32.gmra.mxu0 %v134
    %v316 = vpop.f32.mrf.mxu0
    %v317 = vadd.f32 0.0, %v316
    %318 = vmatmul.f32.gmra.mxu0 %v135
    %v319 = vpop.f32.mrf.mxu0
    %v320 = vadd.f32 0.0, %v319
    %321 = vmatmul.f32.gmra.mxu0 %v136
    %v322 = vpop.f32.mrf.mxu0
    %v323 = vadd.f32 0.0, %v322
    %324 = vmatmul.f32.gmra.mxu0 %v137
    %v325 = vpop.f32.mrf.mxu0
    %v326 = vadd.f32 0.0, %v325
    %327 = vmatmul.f32.gmra.mxu0 %v138
    %v328 = vpop.f32.mrf.mxu0
    %v329 = vadd.f32 0.0, %v328
    %330 = vmatmul.f32.gmra.mxu0 %v139
    %v331 = vpop.f32.mrf.mxu0
    %v332 = vadd.f32 0.0, %v331
    %333 = vdwg.mxu0
    %334 = vmatpush.msra.mxu0 %v202
    %335 = vmatpush.msra.mxu0 %v198
    %336 = vmatpush.msra.mxu0 %v194
    %337 = vmatpush.msra.mxu0 %v190
    %338 = vmatpush.msra.mxu0 %v186
    %339 = vmatpush.msra.mxu0 %v182
    %340 = vmatpush.msra.mxu0 %v178
    %341 = vmatpush.msra.mxu0 %v174
    %342 = vmatpush.msra.mxu0 %v170
    %343 = vmatpush.msra.mxu0 %v166
    %344 = vmatpush.msra.mxu0 %v162
    %345 = vmatpush.msra.mxu0 %v158
    %346 = vmatpush.msra.mxu0 %v154
    %347 = vmatpush.msra.mxu0 %v150
    %348 = vmatpush.msra.mxu0 %v146
    %349 = vmatpush.msra.mxu0 %v142
    %350 = vmatmul.f32.gmra.mxu0 %v124
    %v351 = vpop.f32.mrf.mxu0
    %v352 = vadd.f32 0.0, %v351
    %353 = vmatmul.f32.gmra.mxu0 %v125
    %v354 = vpop.f32.mrf.mxu0
    %v355 = vadd.f32 0.0, %v354
    %356 = vmatmul.f32.gmra.mxu0 %v126
    %v357 = vpop.f32.mrf.mxu0
    %v358 = vadd.f32 0.0, %v357
    %359 = vmatmul.f32.gmra.mxu0 %v127
    %v360 = vpop.f32.mrf.mxu0
    %v361 = vadd.f32 0.0, %v360
    %362 = vmatmul.f32.gmra.mxu0 %v128
    %v363 = vpop.f32.mrf.mxu0
    %v364 = vadd.f32 0.0, %v363
    %365 = vmatmul.f32.gmra.mxu0 %v129
    %v366 = vpop.f32.mrf.mxu0
    %v367 = vadd.f32 0.0, %v366
    %368 = vmatmul.f32.gmra.mxu0 %v130
    %v369 = vpop.f32.mrf.mxu0
    %v370 = vadd.f32 0.0, %v369
    %371 = vmatmul.f32.gmra.mxu0 %v131
    %v372 = vpop.f32.mrf.mxu0
    %v373 = vadd.f32 0.0, %v372
    %374 = vmatmul.f32.gmra.mxu0 %v132
    %v375 = vpop.f32.mrf.mxu0
    %v376 = vadd.f32 0.0, %v375
    %377 = vmatmul.f32.gmra.mxu0 %v133
    %v378 = vpop.f32.mrf.mxu0
    %v379 = vadd.f32 0.0, %v378
    %380 = vmatmul.f32.gmra.mxu0 %v134
    %v381 = vpop.f32.mrf.mxu0
    %v382 = vadd.f32 0.0, %v381
    %383 = vmatmul.f32.gmra.mxu0 %v135
    %v384 = vpop.f32.mrf.mxu0
    %v385 = vadd.f32 0.0, %v384
    %386 = vmatmul.f32.gmra.mxu0 %v136
    %v387 = vpop.f32.mrf.mxu0
    %v388 = vadd.f32 0.0, %v387
    %389 = vmatmul.f32.gmra.mxu0 %v137
    %v390 = vpop.f32.mrf.mxu0
    %v391 = vadd.f32 0.0, %v390
    %392 = vmatmul.f32.gmra.mxu0 %v138
    %v393 = vpop.f32.mrf.mxu0
    %v394 = vadd.f32 0.0, %v393
    %395 = vmatmul.f32.gmra.mxu0 %v139
    %v396 = vpop.f32.mrf.mxu0
    %v397 = vadd.f32 0.0, %v396
    %398 = vdwg.mxu0
    %399 = vmatpush.msra.mxu0 %v203
    %400 = vmatpush.msra.mxu0 %v199
    %401 = vmatpush.msra.mxu0 %v195
    %402 = vmatpush.msra.mxu0 %v191
    %403 = vmatpush.msra.mxu0 %v187
    %404 = vmatpush.msra.mxu0 %v183
    %405 = vmatpush.msra.mxu0 %v179
    %406 = vmatpush.msra.mxu0 %v175
    %407 = vmatpush.msra.mxu0 %v171
    %408 = vmatpush.msra.mxu0 %v167
    %409 = vmatpush.msra.mxu0 %v163
    %410 = vmatpush.msra.mxu0 %v159
    %411 = vmatpush.msra.mxu0 %v155
    %412 = vmatpush.msra.mxu0 %v151
    %413 = vmatpush.msra.mxu0 %v147
    %414 = vmatpush.msra.mxu0 %v143
    %415 = vmatmul.f32.gmra.mxu0 %v124
    %v416 = vpop.f32.mrf.mxu0
    %v417 = vadd.f32 0.0, %v416
    %418 = vmatmul.f32.gmra.mxu0 %v125
    %v419 = vpop.f32.mrf.mxu0
    %v420 = vadd.f32 0.0, %v419
    %421 = vmatmul.f32.gmra.mxu0 %v126
    %v422 = vpop.f32.mrf.mxu0
    %v423 = vadd.f32 0.0, %v422
    %424 = vmatmul.f32.gmra.mxu0 %v127
    %v425 = vpop.f32.mrf.mxu0
    %v426 = vadd.f32 0.0, %v425
    %427 = vmatmul.f32.gmra.mxu0 %v128
    %v428 = vpop.f32.mrf.mxu0
    %v429 = vadd.f32 0.0, %v428
    %430 = vmatmul.f32.gmra.mxu0 %v129
    %v431 = vpop.f32.mrf.mxu0
    %v432 = vadd.f32 0.0, %v431
    %433 = vmatmul.f32.gmra.mxu0 %v130
    %v434 = vpop.f32.mrf.mxu0
    %v435 = vadd.f32 0.0, %v434
    %436 = vmatmul.f32.gmra.mxu0 %v131
    %v437 = vpop.f32.mrf.mxu0
    %v438 = vadd.f32 0.0, %v437
    %439 = vmatmul.f32.gmra.mxu0 %v132
    %v440 = vpop.f32.mrf.mxu0
    %v441 = vadd.f32 0.0, %v440
    %442 = vmatmul.f32.gmra.mxu0 %v133
    %v443 = vpop.f32.mrf.mxu0
    %v444 = vadd.f32 0.0, %v443
    %445 = vmatmul.f32.gmra.mxu0 %v134
    %v446 = vpop.f32.mrf.mxu0
    %v447 = vadd.f32 0.0, %v446
    %448 = vmatmul.f32.gmra.mxu0 %v135
    %v449 = vpop.f32.mrf.mxu0
    %v450 = vadd.f32 0.0, %v449
    %451 = vmatmul.f32.gmra.mxu0 %v136
    %v452 = vpop.f32.mrf.mxu0
    %v453 = vadd.f32 0.0, %v452
    %454 = vmatmul.f32.gmra.mxu0 %v137
    %v455 = vpop.f32.mrf.mxu0
    %v456 = vadd.f32 0.0, %v455
    %457 = vmatmul.f32.gmra.mxu0 %v138
    %v458 = vpop.f32.mrf.mxu0
    %v459 = vadd.f32 0.0, %v458
    %460 = vmatmul.f32.gmra.mxu0 %v139
    %v461 = vpop.f32.mrf.mxu0
    %v462 = vadd.f32 0.0, %v461
    %463 = vdwg.mxu0
    %v464 = vpack.c.bf16 %v420, %v417
    %v465 = vpack.c.bf16 %v426, %v423
    %v466 = vpack.c.bf16 %v432, %v429
    %v467 = vpack.c.bf16 %v438, %v435
    %v468 = vpack.c.bf16 %v444, %v441
    %v469 = vpack.c.bf16 %v450, %v447
    %v470 = vpack.c.bf16 %v456, %v453
    %v471 = vpack.c.bf16 %v462, %v459
    %v488 = vunpack.c.l.b16 %v108
    %v489 = vunpack.c.l.b16 %v109
    %v490 = vunpack.c.l.b16 %v110
    %v491 = vunpack.c.l.b16 %v111
    %v492 = vunpack.c.l.b16 %v112
    %v493 = vunpack.c.l.b16 %v113
    %v494 = vunpack.c.l.b16 %v114
    %v495 = vunpack.c.l.b16 %v115
    %v496 = vunpack.c.l.b16 %v116
    %v497 = vunpack.c.l.b16 %v117
    %v498 = vunpack.c.l.b16 %v118
    %v499 = vunpack.c.l.b16 %v119
    %v500 = vunpack.c.l.b16 %v120
    %v501 = vunpack.c.l.b16 %v121
    %v502 = vunpack.c.l.b16 %v122
    %v503 = vunpack.c.l.b16 %v123
    %v504 = vpack.c.b16 %v489, %v488
    %v505 = vpack.c.b16 %v491, %v490
    %v506 = vpack.c.b16 %v493, %v492
    %v507 = vpack.c.b16 %v495, %v494
    %v508 = vpack.c.b16 %v497, %v496
    %v509 = vpack.c.b16 %v499, %v498
    %v510 = vpack.c.b16 %v501, %v500
    %v511 = vpack.c.b16 %v503, %v502
    %520 = vmatpush.bf16.msra.mxu0 %v471
    %521 = vmatpush.bf16.msra.mxu0 %v470
    %522 = vmatpush.bf16.msra.mxu0 %v469
    %523 = vmatpush.bf16.msra.mxu0 %v468
    %524 = vmatpush.bf16.msra.mxu0 %v467
    %525 = vmatpush.bf16.msra.mxu0 %v466
    %526 = vmatpush.bf16.msra.mxu0 %v465
    %527 = vmatpush.bf16.msra.mxu0 %v464
    %528 = vmatmul.bf16.gmra.mxu0 %v504
    %v529 = vpop.f32.mrf.mxu0
    %v530 = vadd.f32 0.0, %v529
    %v531 = vpop.f32.mrf.mxu0
    %v532 = vadd.f32 0.0, %v531
    %533 = vmatmul.bf16.gmra.mxu0 %v505
    %v534 = vpop.f32.mrf.mxu0
    %v535 = vadd.f32 0.0, %v534
    %v536 = vpop.f32.mrf.mxu0
    %v537 = vadd.f32 0.0, %v536
    %538 = vmatmul.bf16.gmra.mxu0 %v506
    %v539 = vpop.f32.mrf.mxu0
    %v540 = vadd.f32 0.0, %v539
    %v541 = vpop.f32.mrf.mxu0
    %v542 = vadd.f32 0.0, %v541
    %543 = vmatmul.bf16.gmra.mxu0 %v507
    %v544 = vpop.f32.mrf.mxu0
    %v545 = vadd.f32 0.0, %v544
    %v546 = vpop.f32.mrf.mxu0
    %v547 = vadd.f32 0.0, %v546
    %548 = vmatmul.bf16.gmra.mxu0 %v508
    %v549 = vpop.f32.mrf.mxu0
    %v550 = vadd.f32 0.0, %v549
    %v551 = vpop.f32.mrf.mxu0
    %v552 = vadd.f32 0.0, %v551
    %553 = vmatmul.bf16.gmra.mxu0 %v509
    %v554 = vpop.f32.mrf.mxu0
    %v555 = vadd.f32 0.0, %v554
    %v556 = vpop.f32.mrf.mxu0
    %v557 = vadd.f32 0.0, %v556
    %558 = vmatmul.bf16.gmra.mxu0 %v510
    %v559 = vpop.f32.mrf.mxu0
    %v560 = vadd.f32 0.0, %v559
    %v561 = vpop.f32.mrf.mxu0
    %v562 = vadd.f32 0.0, %v561
    %563 = vmatmul.bf16.gmra.mxu0 %v511
    %v564 = vpop.f32.mrf.mxu0
    %v565 = vadd.f32 0.0, %v564
    %v566 = vpop.f32.mrf.mxu0
    %v567 = vadd.f32 0.0, %v566
    %568 = vdwg.mxu0
    %v569 = vadd.f32 %v352, %v530
    %v570 = vadd.f32 %v355, %v532
    %v571 = vadd.f32 %v358, %v535
    %v572 = vadd.f32 %v361, %v537
    %v573 = vadd.f32 %v364, %v540
    %v574 = vadd.f32 %v367, %v542
    %v575 = vadd.f32 %v370, %v545
    %v576 = vadd.f32 %v373, %v547
    %v577 = vadd.f32 %v376, %v550
    %v578 = vadd.f32 %v379, %v552
    %v579 = vadd.f32 %v382, %v555
    %v580 = vadd.f32 %v385, %v557
    %v581 = vadd.f32 %v388, %v560
    %v582 = vadd.f32 %v391, %v562
    %v583 = vadd.f32 %v394, %v565
    %v584 = vadd.f32 %v397, %v567
    %v585 = vpack.c.bf16 %v570, %v569
    %v586 = vpack.c.bf16 %v572, %v571
    %v587 = vpack.c.bf16 %v574, %v573
    %v588 = vpack.c.bf16 %v576, %v575
    %v589 = vpack.c.bf16 %v578, %v577
    %v590 = vpack.c.bf16 %v580, %v579
    %v591 = vpack.c.bf16 %v582, %v581
    %v592 = vpack.c.bf16 %v584, %v583
    %593 = vmatpush.bf16.msra.mxu0 %v592
    %594 = vmatpush.bf16.msra.mxu0 %v591
    %595 = vmatpush.bf16.msra.mxu0 %v590
    %596 = vmatpush.bf16.msra.mxu0 %v589
    %597 = vmatpush.bf16.msra.mxu0 %v588
    %598 = vmatpush.bf16.msra.mxu0 %v587
    %599 = vmatpush.bf16.msra.mxu0 %v586
    %600 = vmatpush.bf16.msra.mxu0 %v585
    %601 = vmatmul.bf16.gmra.mxu0 %v504
    %v602 = vpop.f32.mrf.mxu0
    %v603 = vadd.f32 0.0, %v602
    %v604 = vpop.f32.mrf.mxu0
    %v605 = vadd.f32 0.0, %v604
    %606 = vmatmul.bf16.gmra.mxu0 %v505
    %v607 = vpop.f32.mrf.mxu0
    %v608 = vadd.f32 0.0, %v607
    %v609 = vpop.f32.mrf.mxu0
    %v610 = vadd.f32 0.0, %v609
    %611 = vmatmul.bf16.gmra.mxu0 %v506
    %v612 = vpop.f32.mrf.mxu0
    %v613 = vadd.f32 0.0, %v612
    %v614 = vpop.f32.mrf.mxu0
    %v615 = vadd.f32 0.0, %v614
    %616 = vmatmul.bf16.gmra.mxu0 %v507
    %v617 = vpop.f32.mrf.mxu0
    %v618 = vadd.f32 0.0, %v617
    %v619 = vpop.f32.mrf.mxu0
    %v620 = vadd.f32 0.0, %v619
    %621 = vmatmul.bf16.gmra.mxu0 %v508
    %v622 = vpop.f32.mrf.mxu0
    %v623 = vadd.f32 0.0, %v622
    %v624 = vpop.f32.mrf.mxu0
    %v625 = vadd.f32 0.0, %v624
    %626 = vmatmul.bf16.gmra.mxu0 %v509
    %v627 = vpop.f32.mrf.mxu0
    %v628 = vadd.f32 0.0, %v627
    %v629 = vpop.f32.mrf.mxu0
    %v630 = vadd.f32 0.0, %v629
    %631 = vmatmul.bf16.gmra.mxu0 %v510
    %v632 = vpop.f32.mrf.mxu0
    %v633 = vadd.f32 0.0, %v632
    %v634 = vpop.f32.mrf.mxu0
    %v635 = vadd.f32 0.0, %v634
    %636 = vmatmul.bf16.gmra.mxu0 %v511
    %v637 = vpop.f32.mrf.mxu0
    %v638 = vadd.f32 0.0, %v637
    %v639 = vpop.f32.mrf.mxu0
    %v640 = vadd.f32 0.0, %v639
    %641 = vdwg.mxu0
    %v642 = vadd.f32 %v287, %v603
    %v643 = vadd.f32 %v290, %v605
    %v644 = vadd.f32 %v293, %v608
    %v645 = vadd.f32 %v296, %v610
    %v646 = vadd.f32 %v299, %v613
    %v647 = vadd.f32 %v302, %v615
    %v648 = vadd.f32 %v305, %v618
    %v649 = vadd.f32 %v308, %v620
    %v650 = vadd.f32 %v311, %v623
    %v651 = vadd.f32 %v314, %v625
    %v652 = vadd.f32 %v317, %v628
    %v653 = vadd.f32 %v320, %v630
    %v654 = vadd.f32 %v323, %v633
    %v655 = vadd.f32 %v326, %v635
    %v656 = vadd.f32 %v329, %v638
    %v657 = vadd.f32 %v332, %v640
    %v658 = vpack.c.bf16 %v643, %v642
    %v659 = vpack.c.bf16 %v645, %v644
    %v660 = vpack.c.bf16 %v647, %v646
    %v661 = vpack.c.bf16 %v649, %v648
    %v662 = vpack.c.bf16 %v651, %v650
    %v663 = vpack.c.bf16 %v653, %v652
    %v664 = vpack.c.bf16 %v655, %v654
    %v665 = vpack.c.bf16 %v657, %v656
    %666 = vmatpush.bf16.msra.mxu0 %v665
    %667 = vmatpush.bf16.msra.mxu0 %v664
    %668 = vmatpush.bf16.msra.mxu0 %v663
    %669 = vmatpush.bf16.msra.mxu0 %v662
    %670 = vmatpush.bf16.msra.mxu0 %v661
    %671 = vmatpush.bf16.msra.mxu0 %v660
    %672 = vmatpush.bf16.msra.mxu0 %v659
    %673 = vmatpush.bf16.msra.mxu0 %v658
    %674 = vmatmul.bf16.gmra.mxu0 %v504
    %v675 = vpop.f32.mrf.mxu0
    %v676 = vadd.f32 0.0, %v675
    %v677 = vpop.f32.mrf.mxu0
    %v678 = vadd.f32 0.0, %v677
    %679 = vmatmul.bf16.gmra.mxu0 %v505
    %v680 = vpop.f32.mrf.mxu0
    %v681 = vadd.f32 0.0, %v680
    %v682 = vpop.f32.mrf.mxu0
    %v683 = vadd.f32 0.0, %v682
    %684 = vmatmul.bf16.gmra.mxu0 %v506
    %v685 = vpop.f32.mrf.mxu0
    %v686 = vadd.f32 0.0, %v685
    %v687 = vpop.f32.mrf.mxu0
    %v688 = vadd.f32 0.0, %v687
    %689 = vmatmul.bf16.gmra.mxu0 %v507
    %v690 = vpop.f32.mrf.mxu0
    %v691 = vadd.f32 0.0, %v690
    %v692 = vpop.f32.mrf.mxu0
    %v693 = vadd.f32 0.0, %v692
    %694 = vmatmul.bf16.gmra.mxu0 %v508
    %v695 = vpop.f32.mrf.mxu0
    %v696 = vadd.f32 0.0, %v695
    %v697 = vpop.f32.mrf.mxu0
    %v698 = vadd.f32 0.0, %v697
    %699 = vmatmul.bf16.gmra.mxu0 %v509
    %v700 = vpop.f32.mrf.mxu0
    %v701 = vadd.f32 0.0, %v700
    %v702 = vpop.f32.mrf.mxu0
    %v703 = vadd.f32 0.0, %v702
    %704 = vmatmul.bf16.gmra.mxu0 %v510
    %v705 = vpop.f32.mrf.mxu0
    %v706 = vadd.f32 0.0, %v705
    %v707 = vpop.f32.mrf.mxu0
    %v708 = vadd.f32 0.0, %v707
    %709 = vmatmul.bf16.gmra.mxu0 %v511
    %v710 = vpop.f32.mrf.mxu0
    %v711 = vadd.f32 0.0, %v710
    %v712 = vpop.f32.mrf.mxu0
    %v713 = vadd.f32 0.0, %v712
    %714 = vdwg.mxu0
    %v715 = vadd.f32 %v222, %v676
    %v716 = vadd.f32 %v225, %v678
    %v717 = vadd.f32 %v228, %v681
    %v718 = vadd.f32 %v231, %v683
    %v719 = vadd.f32 %v234, %v686
    %v720 = vadd.f32 %v237, %v688
    %v721 = vadd.f32 %v240, %v691
    %v722 = vadd.f32 %v243, %v693
    %v723 = vadd.f32 %v246, %v696
    %v724 = vadd.f32 %v249, %v698
    %v725 = vadd.f32 %v252, %v701
    %v726 = vadd.f32 %v255, %v703
    %v727 = vadd.f32 %v258, %v706
    %v728 = vadd.f32 %v261, %v708
    %v729 = vadd.f32 %v264, %v711
    %v730 = vadd.f32 %v267, %v713
    %v731 = vld [vmem:[%s3] sm:$0x1]
    %v733 = vperm.slane %v731, 0
    %v735 = vadd.f32 %v715, %v733
    %v736 = vadd.f32 %v716, %v733
    %v737 = vadd.f32 %v717, %v733
    %v738 = vadd.f32 %v718, %v733
    %v739 = vadd.f32 %v719, %v733
    %v740 = vadd.f32 %v720, %v733
    %v741 = vadd.f32 %v721, %v733
    %v742 = vadd.f32 %v722, %v733
    %v743 = vadd.f32 %v723, %v733
    %v744 = vadd.f32 %v724, %v733
    %v745 = vadd.f32 %v725, %v733
    %v746 = vadd.f32 %v726, %v733
    %v747 = vadd.f32 %v727, %v733
    %v748 = vadd.f32 %v728, %v733
    %v749 = vadd.f32 %v729, %v733
    %v750 = vadd.f32 %v730, %v733
    %v751 = vmax.f32 %v735, 0.0
    %v752 = vmax.f32 %v736, 0.0
    %v753 = vmax.f32 %v737, 0.0
    %v754 = vmax.f32 %v738, 0.0
    %v755 = vmax.f32 %v739, 0.0
    %v756 = vmax.f32 %v740, 0.0
    %v757 = vmax.f32 %v741, 0.0
    %v758 = vmax.f32 %v742, 0.0
    %v759 = vmax.f32 %v743, 0.0
    %v760 = vmax.f32 %v744, 0.0
    %v761 = vmax.f32 %v745, 0.0
    %v762 = vmax.f32 %v746, 0.0
    %v763 = vmax.f32 %v747, 0.0
    %v764 = vmax.f32 %v748, 0.0
    %v765 = vmax.f32 %v749, 0.0
    %v766 = vmax.f32 %v750, 0.0
    %v767 = vld [vmem:[#allocation8] sm:$0xff]
    %v768 = vld [vmem:[#allocation8 + $0x8] sm:$0xff]
    %v769 = vld [vmem:[#allocation8 + $0x10] sm:$0xff]
    %v770 = vld [vmem:[#allocation8 + $0x18] sm:$0xff]
    %v771 = vld [vmem:[#allocation8 + $0x20] sm:$0xff]
    %v772 = vld [vmem:[#allocation8 + $0x28] sm:$0xff]
    %v773 = vld [vmem:[#allocation8 + $0x30] sm:$0xff]
    %v774 = vld [vmem:[#allocation8 + $0x38] sm:$0xff]
    %v775 = vld [vmem:[#allocation8 + $0x40] sm:$0xff]
    %v776 = vld [vmem:[#allocation8 + $0x48] sm:$0xff]
    %v777 = vld [vmem:[#allocation8 + $0x50] sm:$0xff]
    %v778 = vld [vmem:[#allocation8 + $0x58] sm:$0xff]
    %v779 = vld [vmem:[#allocation8 + $0x60] sm:$0xff]
    %v780 = vld [vmem:[#allocation8 + $0x68] sm:$0xff]
    %v781 = vld [vmem:[#allocation8 + $0x70] sm:$0xff]
    %v782 = vld [vmem:[#allocation8 + $0x78] sm:$0xff]
    %v783 = vld [vmem:[#allocation8 + $0x80] sm:$0xff]
    %v784 = vld [vmem:[#allocation8 + $0x88] sm:$0xff]
    %v785 = vld [vmem:[#allocation8 + $0x90] sm:$0xff]
    %v786 = vld [vmem:[#allocation8 + $0x98] sm:$0xff]
    %v787 = vld [vmem:[#allocation8 + $0xa0] sm:$0xff]
    %v788 = vld [vmem:[#allocation8 + $0xa8] sm:$0xff]
    %v789 = vld [vmem:[#allocation8 + $0xb0] sm:$0xff]
    %v790 = vld [vmem:[#allocation8 + $0xb8] sm:$0xff]
    %v791 = vld [vmem:[#allocation8 + $0xc0] sm:$0xff]
    %v792 = vld [vmem:[#allocation8 + $0xc8] sm:$0xff]
    %v793 = vld [vmem:[#allocation8 + $0xd0] sm:$0xff]
    %v794 = vld [vmem:[#allocation8 + $0xd8] sm:$0xff]
    %v795 = vld [vmem:[#allocation8 + $0xe0] sm:$0xff]
    %v796 = vld [vmem:[#allocation8 + $0xe8] sm:$0xff]
    %v797 = vld [vmem:[#allocation8 + $0xf0] sm:$0xff]
    %v798 = vld [vmem:[#allocation8 + $0xf8] sm:$0xff]
    %v799 = vld [vmem:[#allocation8 + $0x100] sm:$0xff]
    %v800 = vld [vmem:[#allocation8 + $0x108] sm:$0xff]
    %v801 = vld [vmem:[#allocation8 + $0x110] sm:$0xff]
    %v802 = vld [vmem:[#allocation8 + $0x118] sm:$0xff]
    %v803 = vld [vmem:[#allocation8 + $0x120] sm:$0xff]
    %v804 = vld [vmem:[#allocation8 + $0x128] sm:$0xff]
    %v805 = vld [vmem:[#allocation8 + $0x130] sm:$0xff]
    %v806 = vld [vmem:[#allocation8 + $0x138] sm:$0xff]
    %v807 = vld [vmem:[#allocation8 + $0x140] sm:$0xff]
    %v808 = vld [vmem:[#allocation8 + $0x148] sm:$0xff]
    %v809 = vld [vmem:[#allocation8 + $0x150] sm:$0xff]
    %v810 = vld [vmem:[#allocation8 + $0x158] sm:$0xff]
    %v811 = vld [vmem:[#allocation8 + $0x160] sm:$0xff]
    %v812 = vld [vmem:[#allocation8 + $0x168] sm:$0xff]
    %v813 = vld [vmem:[#allocation8 + $0x170] sm:$0xff]
    %v814 = vld [vmem:[#allocation8 + $0x178] sm:$0xff]
    %v815 = vld [vmem:[#allocation8 + $0x180] sm:$0xff]
    %v816 = vld [vmem:[#allocation8 + $0x188] sm:$0xff]
    %v817 = vld [vmem:[#allocation8 + $0x190] sm:$0xff]
    %v818 = vld [vmem:[#allocation8 + $0x198] sm:$0xff]
    %v819 = vld [vmem:[#allocation8 + $0x1a0] sm:$0xff]
    %v820 = vld [vmem:[#allocation8 + $0x1a8] sm:$0xff]
    %v821 = vld [vmem:[#allocation8 + $0x1b0] sm:$0xff]
    %v822 = vld [vmem:[#allocation8 + $0x1b8] sm:$0xff]
    %v823 = vld [vmem:[#allocation8 + $0x1c0] sm:$0xff]
    %v824 = vld [vmem:[#allocation8 + $0x1c8] sm:$0xff]
    %v825 = vld [vmem:[#allocation8 + $0x1d0] sm:$0xff]
    %v826 = vld [vmem:[#allocation8 + $0x1d8] sm:$0xff]
    %v827 = vld [vmem:[#allocation8 + $0x1e0] sm:$0xff]
    %v828 = vld [vmem:[#allocation8 + $0x1e8] sm:$0xff]
    %v829 = vld [vmem:[#allocation8 + $0x1f0] sm:$0xff]
    %v830 = vld [vmem:[#allocation8 + $0x1f8] sm:$0xff]
    %831 = vmatpush.msra.mxu0 %v827
    %832 = vmatpush.msra.mxu0 %v823
    %833 = vmatpush.msra.mxu0 %v819
    %834 = vmatpush.msra.mxu0 %v815
    %835 = vmatpush.msra.mxu0 %v811
    %836 = vmatpush.msra.mxu0 %v807
    %837 = vmatpush.msra.mxu0 %v803
    %838 = vmatpush.msra.mxu0 %v799
    %839 = vmatpush.msra.mxu0 %v795
    %840 = vmatpush.msra.mxu0 %v791
    %841 = vmatpush.msra.mxu0 %v787
    %842 = vmatpush.msra.mxu0 %v783
    %843 = vmatpush.msra.mxu0 %v779
    %844 = vmatpush.msra.mxu0 %v775
    %845 = vmatpush.msra.mxu0 %v771
    %846 = vmatpush.msra.mxu0 %v767
    %847 = vmatmul.f32.gmra.mxu0 %v751
    %v848 = vpop.f32.mrf.mxu0
    %v849 = vadd.f32 0.0, %v848
    %850 = vmatmul.f32.gmra.mxu0 %v752
    %v851 = vpop.f32.mrf.mxu0
    %v852 = vadd.f32 0.0, %v851
    %853 = vmatmul.f32.gmra.mxu0 %v753
    %v854 = vpop.f32.mrf.mxu0
    %v855 = vadd.f32 0.0, %v854
    %856 = vmatmul.f32.gmra.mxu0 %v754
    %v857 = vpop.f32.mrf.mxu0
    %v858 = vadd.f32 0.0, %v857
    %859 = vmatmul.f32.gmra.mxu0 %v755
    %v860 = vpop.f32.mrf.mxu0
    %v861 = vadd.f32 0.0, %v860
    %862 = vmatmul.f32.gmra.mxu0 %v756
    %v863 = vpop.f32.mrf.mxu0
    %v864 = vadd.f32 0.0, %v863
    %865 = vmatmul.f32.gmra.mxu0 %v757
    %v866 = vpop.f32.mrf.mxu0
    %v867 = vadd.f32 0.0, %v866
    %868 = vmatmul.f32.gmra.mxu0 %v758
    %v869 = vpop.f32.mrf.mxu0
    %v870 = vadd.f32 0.0, %v869
    %871 = vmatmul.f32.gmra.mxu0 %v759
    %v872 = vpop.f32.mrf.mxu0
    %v873 = vadd.f32 0.0, %v872
    %874 = vmatmul.f32.gmra.mxu0 %v760
    %v875 = vpop.f32.mrf.mxu0
    %v876 = vadd.f32 0.0, %v875
    %877 = vmatmul.f32.gmra.mxu0 %v761
    %v878 = vpop.f32.mrf.mxu0
    %v879 = vadd.f32 0.0, %v878
    %880 = vmatmul.f32.gmra.mxu0 %v762
    %v881 = vpop.f32.mrf.mxu0
    %v882 = vadd.f32 0.0, %v881
    %883 = vmatmul.f32.gmra.mxu0 %v763
    %v884 = vpop.f32.mrf.mxu0
    %v885 = vadd.f32 0.0, %v884
    %886 = vmatmul.f32.gmra.mxu0 %v764
    %v887 = vpop.f32.mrf.mxu0
    %v888 = vadd.f32 0.0, %v887
    %889 = vmatmul.f32.gmra.mxu0 %v765
    %v890 = vpop.f32.mrf.mxu0
    %v891 = vadd.f32 0.0, %v890
    %892 = vmatmul.f32.gmra.mxu0 %v766
    %v893 = vpop.f32.mrf.mxu0
    %v894 = vadd.f32 0.0, %v893
    %895 = vdwg.mxu0
    %896 = vmatpush.msra.mxu0 %v828
    %897 = vmatpush.msra.mxu0 %v824
    %898 = vmatpush.msra.mxu0 %v820
    %899 = vmatpush.msra.mxu0 %v816
    %900 = vmatpush.msra.mxu0 %v812
    %901 = vmatpush.msra.mxu0 %v808
    %902 = vmatpush.msra.mxu0 %v804
    %903 = vmatpush.msra.mxu0 %v800
    %904 = vmatpush.msra.mxu0 %v796
    %905 = vmatpush.msra.mxu0 %v792
    %906 = vmatpush.msra.mxu0 %v788
    %907 = vmatpush.msra.mxu0 %v784
    %908 = vmatpush.msra.mxu0 %v780
    %909 = vmatpush.msra.mxu0 %v776
    %910 = vmatpush.msra.mxu0 %v772
    %911 = vmatpush.msra.mxu0 %v768
    %912 = vmatmul.f32.gmra.mxu0 %v751
    %v913 = vpop.f32.mrf.mxu0
    %v914 = vadd.f32 0.0, %v913
    %915 = vmatmul.f32.gmra.mxu0 %v752
    %v916 = vpop.f32.mrf.mxu0
    %v917 = vadd.f32 0.0, %v916
    %918 = vmatmul.f32.gmra.mxu0 %v753
    %v919 = vpop.f32.mrf.mxu0
    %v920 = vadd.f32 0.0, %v919
    %921 = vmatmul.f32.gmra.mxu0 %v754
    %v922 = vpop.f32.mrf.mxu0
    %v923 = vadd.f32 0.0, %v922
    %924 = vmatmul.f32.gmra.mxu0 %v755
    %v925 = vpop.f32.mrf.mxu0
    %v926 = vadd.f32 0.0, %v925
    %927 = vmatmul.f32.gmra.mxu0 %v756
    %v928 = vpop.f32.mrf.mxu0
    %v929 = vadd.f32 0.0, %v928
    %930 = vmatmul.f32.gmra.mxu0 %v757
    %v931 = vpop.f32.mrf.mxu0
    %v932 = vadd.f32 0.0, %v931
    %933 = vmatmul.f32.gmra.mxu0 %v758
    %v934 = vpop.f32.mrf.mxu0
    %v935 = vadd.f32 0.0, %v934
    %936 = vmatmul.f32.gmra.mxu0 %v759
    %v937 = vpop.f32.mrf.mxu0
    %v938 = vadd.f32 0.0, %v937
    %939 = vmatmul.f32.gmra.mxu0 %v760
    %v940 = vpop.f32.mrf.mxu0
    %v941 = vadd.f32 0.0, %v940
    %942 = vmatmul.f32.gmra.mxu0 %v761
    %v943 = vpop.f32.mrf.mxu0
    %v944 = vadd.f32 0.0, %v943
    %945 = vmatmul.f32.gmra.mxu0 %v762
    %v946 = vpop.f32.mrf.mxu0
    %v947 = vadd.f32 0.0, %v946
    %948 = vmatmul.f32.gmra.mxu0 %v763
    %v949 = vpop.f32.mrf.mxu0
    %v950 = vadd.f32 0.0, %v949
    %951 = vmatmul.f32.gmra.mxu0 %v764
    %v952 = vpop.f32.mrf.mxu0
    %v953 = vadd.f32 0.0, %v952
    %954 = vmatmul.f32.gmra.mxu0 %v765
    %v955 = vpop.f32.mrf.mxu0
    %v956 = vadd.f32 0.0, %v955
    %957 = vmatmul.f32.gmra.mxu0 %v766
    %v958 = vpop.f32.mrf.mxu0
    %v959 = vadd.f32 0.0, %v958
    %960 = vdwg.mxu0
    %961 = vmatpush.msra.mxu0 %v829
    %962 = vmatpush.msra.mxu0 %v825
    %963 = vmatpush.msra.mxu0 %v821
    %964 = vmatpush.msra.mxu0 %v817
    %965 = vmatpush.msra.mxu0 %v813
    %966 = vmatpush.msra.mxu0 %v809
    %967 = vmatpush.msra.mxu0 %v805
    %968 = vmatpush.msra.mxu0 %v801
    %969 = vmatpush.msra.mxu0 %v797
    %970 = vmatpush.msra.mxu0 %v793
    %971 = vmatpush.msra.mxu0 %v789
    %972 = vmatpush.msra.mxu0 %v785
    %973 = vmatpush.msra.mxu0 %v781
    %974 = vmatpush.msra.mxu0 %v777
    %975 = vmatpush.msra.mxu0 %v773
    %976 = vmatpush.msra.mxu0 %v769
    %977 = vmatmul.f32.gmra.mxu0 %v751
    %v978 = vpop.f32.mrf.mxu0
    %v979 = vadd.f32 0.0, %v978
    %980 = vmatmul.f32.gmra.mxu0 %v752
    %v981 = vpop.f32.mrf.mxu0
    %v982 = vadd.f32 0.0, %v981
    %983 = vmatmul.f32.gmra.mxu0 %v753
    %v984 = vpop.f32.mrf.mxu0
    %v985 = vadd.f32 0.0, %v984
    %986 = vmatmul.f32.gmra.mxu0 %v754
    %v987 = vpop.f32.mrf.mxu0
    %v988 = vadd.f32 0.0, %v987
    %989 = vmatmul.f32.gmra.mxu0 %v755
    %v990 = vpop.f32.mrf.mxu0
    %v991 = vadd.f32 0.0, %v990
    %992 = vmatmul.f32.gmra.mxu0 %v756
    %v993 = vpop.f32.mrf.mxu0
    %v994 = vadd.f32 0.0, %v993
    %995 = vmatmul.f32.gmra.mxu0 %v757
    %v996 = vpop.f32.mrf.mxu0
    %v997 = vadd.f32 0.0, %v996
    %998 = vmatmul.f32.gmra.mxu0 %v758
    %v999 = vpop.f32.mrf.mxu0
    %v1000 = vadd.f32 0.0, %v999
    %1001 = vmatmul.f32.gmra.mxu0 %v759
    %v1002 = vpop.f32.mrf.mxu0
    %v1003 = vadd.f32 0.0, %v1002
    %1004 = vmatmul.f32.gmra.mxu0 %v760
    %v1005 = vpop.f32.mrf.mxu0
    %v1006 = vadd.f32 0.0, %v1005
    %1007 = vmatmul.f32.gmra.mxu0 %v761
    %v1008 = vpop.f32.mrf.mxu0
    %v1009 = vadd.f32 0.0, %v1008
    %1010 = vmatmul.f32.gmra.mxu0 %v762
    %v1011 = vpop.f32.mrf.mxu0
    %v1012 = vadd.f32 0.0, %v1011
    %1013 = vmatmul.f32.gmra.mxu0 %v763
    %v1014 = vpop.f32.mrf.mxu0
    %v1015 = vadd.f32 0.0, %v1014
    %1016 = vmatmul.f32.gmra.mxu0 %v764
    %v1017 = vpop.f32.mrf.mxu0
    %v1018 = vadd.f32 0.0, %v1017
    %1019 = vmatmul.f32.gmra.mxu0 %v765
    %v1020 = vpop.f32.mrf.mxu0
    %v1021 = vadd.f32 0.0, %v1020
    %1022 = vmatmul.f32.gmra.mxu0 %v766
    %v1023 = vpop.f32.mrf.mxu0
    %v1024 = vadd.f32 0.0, %v1023
    %1025 = vdwg.mxu0
    %1026 = vmatpush.msra.mxu0 %v830
    %1027 = vmatpush.msra.mxu0 %v826
    %1028 = vmatpush.msra.mxu0 %v822
    %1029 = vmatpush.msra.mxu0 %v818
    %1030 = vmatpush.msra.mxu0 %v814
    %1031 = vmatpush.msra.mxu0 %v810
    %1032 = vmatpush.msra.mxu0 %v806
    %1033 = vmatpush.msra.mxu0 %v802
    %1034 = vmatpush.msra.mxu0 %v798
    %1035 = vmatpush.msra.mxu0 %v794
    %1036 = vmatpush.msra.mxu0 %v790
    %1037 = vmatpush.msra.mxu0 %v786
    %1038 = vmatpush.msra.mxu0 %v782
    %1039 = vmatpush.msra.mxu0 %v778
    %1040 = vmatpush.msra.mxu0 %v774
    %1041 = vmatpush.msra.mxu0 %v770
    %1042 = vmatmul.f32.gmra.mxu0 %v751
    %v1043 = vpop.f32.mrf.mxu0
    %v1044 = vadd.f32 0.0, %v1043
    %1045 = vmatmul.f32.gmra.mxu0 %v752
    %v1046 = vpop.f32.mrf.mxu0
    %v1047 = vadd.f32 0.0, %v1046
    %1048 = vmatmul.f32.gmra.mxu0 %v753
    %v1049 = vpop.f32.mrf.mxu0
    %v1050 = vadd.f32 0.0, %v1049
    %1051 = vmatmul.f32.gmra.mxu0 %v754
    %v1052 = vpop.f32.mrf.mxu0
    %v1053 = vadd.f32 0.0, %v1052
    %1054 = vmatmul.f32.gmra.mxu0 %v755
    %v1055 = vpop.f32.mrf.mxu0
    %v1056 = vadd.f32 0.0, %v1055
    %1057 = vmatmul.f32.gmra.mxu0 %v756
    %v1058 = vpop.f32.mrf.mxu0
    %v1059 = vadd.f32 0.0, %v1058
    %1060 = vmatmul.f32.gmra.mxu0 %v757
    %v1061 = vpop.f32.mrf.mxu0
    %v1062 = vadd.f32 0.0, %v1061
    %1063 = vmatmul.f32.gmra.mxu0 %v758
    %v1064 = vpop.f32.mrf.mxu0
    %v1065 = vadd.f32 0.0, %v1064
    %1066 = vmatmul.f32.gmra.mxu0 %v759
    %v1067 = vpop.f32.mrf.mxu0
    %v1068 = vadd.f32 0.0, %v1067
    %1069 = vmatmul.f32.gmra.mxu0 %v760
    %v1070 = vpop.f32.mrf.mxu0
    %v1071 = vadd.f32 0.0, %v1070
    %1072 = vmatmul.f32.gmra.mxu0 %v761
    %v1073 = vpop.f32.mrf.mxu0
    %v1074 = vadd.f32 0.0, %v1073
    %1075 = vmatmul.f32.gmra.mxu0 %v762
    %v1076 = vpop.f32.mrf.mxu0
    %v1077 = vadd.f32 0.0, %v1076
    %1078 = vmatmul.f32.gmra.mxu0 %v763
    %v1079 = vpop.f32.mrf.mxu0
    %v1080 = vadd.f32 0.0, %v1079
    %1081 = vmatmul.f32.gmra.mxu0 %v764
    %v1082 = vpop.f32.mrf.mxu0
    %v1083 = vadd.f32 0.0, %v1082
    %1084 = vmatmul.f32.gmra.mxu0 %v765
    %v1085 = vpop.f32.mrf.mxu0
    %v1086 = vadd.f32 0.0, %v1085
    %1087 = vmatmul.f32.gmra.mxu0 %v766
    %v1088 = vpop.f32.mrf.mxu0
    %v1089 = vadd.f32 0.0, %v1088
    %1090 = vdwg.mxu0
    %v1091 = vpack.c.bf16 %v1047, %v1044
    %v1092 = vpack.c.bf16 %v1053, %v1050
    %v1093 = vpack.c.bf16 %v1059, %v1056
    %v1094 = vpack.c.bf16 %v1065, %v1062
    %v1095 = vpack.c.bf16 %v1071, %v1068
    %v1096 = vpack.c.bf16 %v1077, %v1074
    %v1097 = vpack.c.bf16 %v1083, %v1080
    %v1098 = vpack.c.bf16 %v1089, %v1086
    %1099 = vmatpush.bf16.msra.mxu0 %v1098
    %1100 = vmatpush.bf16.msra.mxu0 %v1097
    %1101 = vmatpush.bf16.msra.mxu0 %v1096
    %1102 = vmatpush.bf16.msra.mxu0 %v1095
    %1103 = vmatpush.bf16.msra.mxu0 %v1094
    %1104 = vmatpush.bf16.msra.mxu0 %v1093
    %1105 = vmatpush.bf16.msra.mxu0 %v1092
    %1106 = vmatpush.bf16.msra.mxu0 %v1091
    %1107 = vmatmul.bf16.gmra.mxu0 %v504
    %v1108 = vpop.f32.mrf.mxu0
    %v1109 = vadd.f32 0.0, %v1108
    %v1110 = vpop.f32.mrf.mxu0
    %v1111 = vadd.f32 0.0, %v1110
    %1112 = vmatmul.bf16.gmra.mxu0 %v505
    %v1113 = vpop.f32.mrf.mxu0
    %v1114 = vadd.f32 0.0, %v1113
    %v1115 = vpop.f32.mrf.mxu0
    %v1116 = vadd.f32 0.0, %v1115
    %1117 = vmatmul.bf16.gmra.mxu0 %v506
    %v1118 = vpop.f32.mrf.mxu0
    %v1119 = vadd.f32 0.0, %v1118
    %v1120 = vpop.f32.mrf.mxu0
    %v1121 = vadd.f32 0.0, %v1120
    %1122 = vmatmul.bf16.gmra.mxu0 %v507
    %v1123 = vpop.f32.mrf.mxu0
    %v1124 = vadd.f32 0.0, %v1123
    %v1125 = vpop.f32.mrf.mxu0
    %v1126 = vadd.f32 0.0, %v1125
    %1127 = vmatmul.bf16.gmra.mxu0 %v508
    %v1128 = vpop.f32.mrf.mxu0
    %v1129 = vadd.f32 0.0, %v1128
    %v1130 = vpop.f32.mrf.mxu0
    %v1131 = vadd.f32 0.0, %v1130
    %1132 = vmatmul.bf16.gmra.mxu0 %v509
    %v1133 = vpop.f32.mrf.mxu0
    %v1134 = vadd.f32 0.0, %v1133
    %v1135 = vpop.f32.mrf.mxu0
    %v1136 = vadd.f32 0.0, %v1135
    %1137 = vmatmul.bf16.gmra.mxu0 %v510
    %v1138 = vpop.f32.mrf.mxu0
    %v1139 = vadd.f32 0.0, %v1138
    %v1140 = vpop.f32.mrf.mxu0
    %v1141 = vadd.f32 0.0, %v1140
    %1142 = vmatmul.bf16.gmra.mxu0 %v511
    %v1143 = vpop.f32.mrf.mxu0
    %v1144 = vadd.f32 0.0, %v1143
    %v1145 = vpop.f32.mrf.mxu0
    %v1146 = vadd.f32 0.0, %v1145
    %1147 = vdwg.mxu0
    %v1148 = vadd.f32 %v979, %v1109
    %v1149 = vadd.f32 %v982, %v1111
    %v1150 = vadd.f32 %v985, %v1114
    %v1151 = vadd.f32 %v988, %v1116
    %v1152 = vadd.f32 %v991, %v1119
    %v1153 = vadd.f32 %v994, %v1121
    %v1154 = vadd.f32 %v997, %v1124
    %v1155 = vadd.f32 %v1000, %v1126
    %v1156 = vadd.f32 %v1003, %v1129
    %v1157 = vadd.f32 %v1006, %v1131
    %v1158 = vadd.f32 %v1009, %v1134
    %v1159 = vadd.f32 %v1012, %v1136
    %v1160 = vadd.f32 %v1015, %v1139
    %v1161 = vadd.f32 %v1018, %v1141
    %v1162 = vadd.f32 %v1021, %v1144
    %v1163 = vadd.f32 %v1024, %v1146
    %v1164 = vpack.c.bf16 %v1149, %v1148
    %v1165 = vpack.c.bf16 %v1151, %v1150
    %v1166 = vpack.c.bf16 %v1153, %v1152
    %v1167 = vpack.c.bf16 %v1155, %v1154
    %v1168 = vpack.c.bf16 %v1157, %v1156
    %v1169 = vpack.c.bf16 %v1159, %v1158
    %v1170 = vpack.c.bf16 %v1161, %v1160
    %v1171 = vpack.c.bf16 %v1163, %v1162
    %1172 = vmatpush.bf16.msra.mxu0 %v1171
    %1173 = vmatpush.bf16.msra.mxu0 %v1170
    %1174 = vmatpush.bf16.msra.mxu0 %v1169
    %1175 = vmatpush.bf16.msra.mxu0 %v1168
    %1176 = vmatpush.bf16.msra.mxu0 %v1167
    %1177 = vmatpush.bf16.msra.mxu0 %v1166
    %1178 = vmatpush.bf16.msra.mxu0 %v1165
    %1179 = vmatpush.bf16.msra.mxu0 %v1164
    %1180 = vmatmul.bf16.gmra.mxu0 %v504
    %v1181 = vpop.f32.mrf.mxu0
    %v1182 = vadd.f32 0.0, %v1181
    %v1183 = vpop.f32.mrf.mxu0
    %v1184 = vadd.f32 0.0, %v1183
    %1185 = vmatmul.bf16.gmra.mxu0 %v505
    %v1186 = vpop.f32.mrf.mxu0
    %v1187 = vadd.f32 0.0, %v1186
    %v1188 = vpop.f32.mrf.mxu0
    %v1189 = vadd.f32 0.0, %v1188
    %1190 = vmatmul.bf16.gmra.mxu0 %v506
    %v1191 = vpop.f32.mrf.mxu0
    %v1192 = vadd.f32 0.0, %v1191
    %v1193 = vpop.f32.mrf.mxu0
    %v1194 = vadd.f32 0.0, %v1193
    %1195 = vmatmul.bf16.gmra.mxu0 %v507
    %v1196 = vpop.f32.mrf.mxu0
    %v1197 = vadd.f32 0.0, %v1196
    %v1198 = vpop.f32.mrf.mxu0
    %v1199 = vadd.f32 0.0, %v1198
    %1200 = vmatmul.bf16.gmra.mxu0 %v508
    %v1201 = vpop.f32.mrf.mxu0
    %v1202 = vadd.f32 0.0, %v1201
    %v1203 = vpop.f32.mrf.mxu0
    %v1204 = vadd.f32 0.0, %v1203
    %1205 = vmatmul.bf16.gmra.mxu0 %v509
    %v1206 = vpop.f32.mrf.mxu0
    %v1207 = vadd.f32 0.0, %v1206
    %v1208 = vpop.f32.mrf.mxu0
    %v1209 = vadd.f32 0.0, %v1208
    %1210 = vmatmul.bf16.gmra.mxu0 %v510
    %v1211 = vpop.f32.mrf.mxu0
    %v1212 = vadd.f32 0.0, %v1211
    %v1213 = vpop.f32.mrf.mxu0
    %v1214 = vadd.f32 0.0, %v1213
    %1215 = vmatmul.bf16.gmra.mxu0 %v511
    %v1216 = vpop.f32.mrf.mxu0
    %v1217 = vadd.f32 0.0, %v1216
    %v1218 = vpop.f32.mrf.mxu0
    %v1219 = vadd.f32 0.0, %v1218
    %1220 = vdwg.mxu0
    %v1221 = vadd.f32 %v914, %v1182
    %v1222 = vadd.f32 %v917, %v1184
    %v1223 = vadd.f32 %v920, %v1187
    %v1224 = vadd.f32 %v923, %v1189
    %v1225 = vadd.f32 %v926, %v1192
    %v1226 = vadd.f32 %v929, %v1194
    %v1227 = vadd.f32 %v932, %v1197
    %v1228 = vadd.f32 %v935, %v1199
    %v1229 = vadd.f32 %v938, %v1202
    %v1230 = vadd.f32 %v941, %v1204
    %v1231 = vadd.f32 %v944, %v1207
    %v1232 = vadd.f32 %v947, %v1209
    %v1233 = vadd.f32 %v950, %v1212
    %v1234 = vadd.f32 %v953, %v1214
    %v1235 = vadd.f32 %v956, %v1217
    %v1236 = vadd.f32 %v959, %v1219
    %v1237 = vpack.c.bf16 %v1222, %v1221
    %v1238 = vpack.c.bf16 %v1224, %v1223
    %v1239 = vpack.c.bf16 %v1226, %v1225
    %v1240 = vpack.c.bf16 %v1228, %v1227
    %v1241 = vpack.c.bf16 %v1230, %v1229
    %v1242 = vpack.c.bf16 %v1232, %v1231
    %v1243 = vpack.c.bf16 %v1234, %v1233
    %v1244 = vpack.c.bf16 %v1236, %v1235
    %1245 = vmatpush.bf16.msra.mxu0 %v1244
    %1246 = vmatpush.bf16.msra.mxu0 %v1243
    %1247 = vmatpush.bf16.msra.mxu0 %v1242
    %1248 = vmatpush.bf16.msra.mxu0 %v1241
    %1249 = vmatpush.bf16.msra.mxu0 %v1240
    %1250 = vmatpush.bf16.msra.mxu0 %v1239
    %1251 = vmatpush.bf16.msra.mxu0 %v1238
    %1252 = vmatpush.bf16.msra.mxu0 %v1237
    %1253 = vmatmul.bf16.gmra.mxu0 %v504
    %v1254 = vpop.f32.mrf.mxu0
    %v1255 = vadd.f32 0.0, %v1254
    %v1256 = vpop.f32.mrf.mxu0
    %v1257 = vadd.f32 0.0, %v1256
    %1258 = vmatmul.bf16.gmra.mxu0 %v505
    %v1259 = vpop.f32.mrf.mxu0
    %v1260 = vadd.f32 0.0, %v1259
    %v1261 = vpop.f32.mrf.mxu0
    %v1262 = vadd.f32 0.0, %v1261
    %1263 = vmatmul.bf16.gmra.mxu0 %v506
    %v1264 = vpop.f32.mrf.mxu0
    %v1265 = vadd.f32 0.0, %v1264
    %v1266 = vpop.f32.mrf.mxu0
    %v1267 = vadd.f32 0.0, %v1266
    %1268 = vmatmul.bf16.gmra.mxu0 %v507
    %v1269 = vpop.f32.mrf.mxu0
    %v1270 = vadd.f32 0.0, %v1269
    %v1271 = vpop.f32.mrf.mxu0
    %v1272 = vadd.f32 0.0, %v1271
    %1273 = vmatmul.bf16.gmra.mxu0 %v508
    %v1274 = vpop.f32.mrf.mxu0
    %v1275 = vadd.f32 0.0, %v1274
    %v1276 = vpop.f32.mrf.mxu0
    %v1277 = vadd.f32 0.0, %v1276
    %1278 = vmatmul.bf16.gmra.mxu0 %v509
    %v1279 = vpop.f32.mrf.mxu0
    %v1280 = vadd.f32 0.0, %v1279
    %v1281 = vpop.f32.mrf.mxu0
    %v1282 = vadd.f32 0.0, %v1281
    %1283 = vmatmul.bf16.gmra.mxu0 %v510
    %v1284 = vpop.f32.mrf.mxu0
    %v1285 = vadd.f32 0.0, %v1284
    %v1286 = vpop.f32.mrf.mxu0
    %v1287 = vadd.f32 0.0, %v1286
    %1288 = vmatmul.bf16.gmra.mxu0 %v511
    %v1289 = vpop.f32.mrf.mxu0
    %v1290 = vadd.f32 0.0, %v1289
    %v1291 = vpop.f32.mrf.mxu0
    %v1292 = vadd.f32 0.0, %v1291
    %1293 = vdwg.mxu0
    %v1294 = vadd.f32 %v849, %v1255
    %v1295 = vadd.f32 %v852, %v1257
    %v1296 = vadd.f32 %v855, %v1260
    %v1297 = vadd.f32 %v858, %v1262
    %v1298 = vadd.f32 %v861, %v1265
    %v1299 = vadd.f32 %v864, %v1267
    %v1300 = vadd.f32 %v867, %v1270
    %v1301 = vadd.f32 %v870, %v1272
    %v1302 = vadd.f32 %v873, %v1275
    %v1303 = vadd.f32 %v876, %v1277
    %v1304 = vadd.f32 %v879, %v1280
    %v1305 = vadd.f32 %v882, %v1282
    %v1306 = vadd.f32 %v885, %v1285
    %v1307 = vadd.f32 %v888, %v1287
    %v1308 = vadd.f32 %v891, %v1290
    %v1309 = vadd.f32 %v894, %v1292
    %v1310 = vld [vmem:[%s5] sm:$0x1]
    %v1312 = vperm.slane %v1310, 0
    %v1314 = vadd.f32 %v1294, %v1312
    %v1315 = vadd.f32 %v1295, %v1312
    %v1316 = vadd.f32 %v1296, %v1312
    %v1317 = vadd.f32 %v1297, %v1312
    %v1318 = vadd.f32 %v1298, %v1312
    %v1319 = vadd.f32 %v1299, %v1312
    %v1320 = vadd.f32 %v1300, %v1312
    %v1321 = vadd.f32 %v1301, %v1312
    %v1322 = vadd.f32 %v1302, %v1312
    %v1323 = vadd.f32 %v1303, %v1312
    %v1324 = vadd.f32 %v1304, %v1312
    %v1325 = vadd.f32 %v1305, %v1312
    %v1326 = vadd.f32 %v1306, %v1312
    %v1327 = vadd.f32 %v1307, %v1312
    %v1328 = vadd.f32 %v1308, %v1312
    %v1329 = vadd.f32 %v1309, %v1312
    %v1330 = vmax.f32 %v1314, 0.0
    %v1331 = vmax.f32 %v1315, 0.0
    %v1332 = vmax.f32 %v1316, 0.0
    %v1333 = vmax.f32 %v1317, 0.0
    %v1334 = vmax.f32 %v1318, 0.0
    %v1335 = vmax.f32 %v1319, 0.0
    %v1336 = vmax.f32 %v1320, 0.0
    %v1337 = vmax.f32 %v1321, 0.0
    %v1338 = vmax.f32 %v1322, 0.0
    %v1339 = vmax.f32 %v1323, 0.0
    %v1340 = vmax.f32 %v1324, 0.0
    %v1341 = vmax.f32 %v1325, 0.0
    %v1342 = vmax.f32 %v1326, 0.0
    %v1343 = vmax.f32 %v1327, 0.0
    %v1344 = vmax.f32 %v1328, 0.0
    %v1345 = vmax.f32 %v1329, 0.0
    %v1346 = vld [vmem:[#allocation10] sm:$0xff]
    %v1347 = vld [vmem:[#allocation10 + $0x8] sm:$0xff]
    %v1348 = vld [vmem:[#allocation10 + $0x10] sm:$0xff]
    %v1349 = vld [vmem:[#allocation10 + $0x18] sm:$0xff]
    %v1350 = vld [vmem:[#allocation10 + $0x20] sm:$0xff]
    %v1351 = vld [vmem:[#allocation10 + $0x28] sm:$0xff]
    %v1352 = vld [vmem:[#allocation10 + $0x30] sm:$0xff]
    %v1353 = vld [vmem:[#allocation10 + $0x38] sm:$0xff]
    %v1354 = vld [vmem:[#allocation10 + $0x40] sm:$0xff]
    %v1355 = vld [vmem:[#allocation10 + $0x48] sm:$0xff]
    %v1356 = vld [vmem:[#allocation10 + $0x50] sm:$0xff]
    %v1357 = vld [vmem:[#allocation10 + $0x58] sm:$0xff]
    %v1358 = vld [vmem:[#allocation10 + $0x60] sm:$0xff]
    %v1359 = vld [vmem:[#allocation10 + $0x68] sm:$0xff]
    %v1360 = vld [vmem:[#allocation10 + $0x70] sm:$0xff]
    %v1361 = vld [vmem:[#allocation10 + $0x78] sm:$0xff]
    %v1362 = vld [vmem:[#allocation10 + $0x80] sm:$0xff]
    %v1363 = vld [vmem:[#allocation10 + $0x88] sm:$0xff]
    %v1364 = vld [vmem:[#allocation10 + $0x90] sm:$0xff]
    %v1365 = vld [vmem:[#allocation10 + $0x98] sm:$0xff]
    %v1366 = vld [vmem:[#allocation10 + $0xa0] sm:$0xff]
    %v1367 = vld [vmem:[#allocation10 + $0xa8] sm:$0xff]
    %v1368 = vld [vmem:[#allocation10 + $0xb0] sm:$0xff]
    %v1369 = vld [vmem:[#allocation10 + $0xb8] sm:$0xff]
    %v1370 = vld [vmem:[#allocation10 + $0xc0] sm:$0xff]
    %v1371 = vld [vmem:[#allocation10 + $0xc8] sm:$0xff]
    %v1372 = vld [vmem:[#allocation10 + $0xd0] sm:$0xff]
    %v1373 = vld [vmem:[#allocation10 + $0xd8] sm:$0xff]
    %v1374 = vld [vmem:[#allocation10 + $0xe0] sm:$0xff]
    %v1375 = vld [vmem:[#allocation10 + $0xe8] sm:$0xff]
    %v1376 = vld [vmem:[#allocation10 + $0xf0] sm:$0xff]
    %v1377 = vld [vmem:[#allocation10 + $0xf8] sm:$0xff]
    %v1378 = vld [vmem:[#allocation10 + $0x100] sm:$0xff]
    %v1379 = vld [vmem:[#allocation10 + $0x108] sm:$0xff]
    %v1380 = vld [vmem:[#allocation10 + $0x110] sm:$0xff]
    %v1381 = vld [vmem:[#allocation10 + $0x118] sm:$0xff]
    %v1382 = vld [vmem:[#allocation10 + $0x120] sm:$0xff]
    %v1383 = vld [vmem:[#allocation10 + $0x128] sm:$0xff]
    %v1384 = vld [vmem:[#allocation10 + $0x130] sm:$0xff]
    %v1385 = vld [vmem:[#allocation10 + $0x138] sm:$0xff]
    %v1386 = vld [vmem:[#allocation10 + $0x140] sm:$0xff]
    %v1387 = vld [vmem:[#allocation10 + $0x148] sm:$0xff]
    %v1388 = vld [vmem:[#allocation10 + $0x150] sm:$0xff]
    %v1389 = vld [vmem:[#allocation10 + $0x158] sm:$0xff]
    %v1390 = vld [vmem:[#allocation10 + $0x160] sm:$0xff]
    %v1391 = vld [vmem:[#allocation10 + $0x168] sm:$0xff]
    %v1392 = vld [vmem:[#allocation10 + $0x170] sm:$0xff]
    %v1393 = vld [vmem:[#allocation10 + $0x178] sm:$0xff]
    %v1394 = vld [vmem:[#allocation10 + $0x180] sm:$0xff]
    %v1395 = vld [vmem:[#allocation10 + $0x188] sm:$0xff]
    %v1396 = vld [vmem:[#allocation10 + $0x190] sm:$0xff]
    %v1397 = vld [vmem:[#allocation10 + $0x198] sm:$0xff]
    %v1398 = vld [vmem:[#allocation10 + $0x1a0] sm:$0xff]
    %v1399 = vld [vmem:[#allocation10 + $0x1a8] sm:$0xff]
    %v1400 = vld [vmem:[#allocation10 + $0x1b0] sm:$0xff]
    %v1401 = vld [vmem:[#allocation10 + $0x1b8] sm:$0xff]
    %v1402 = vld [vmem:[#allocation10 + $0x1c0] sm:$0xff]
    %v1403 = vld [vmem:[#allocation10 + $0x1c8] sm:$0xff]
    %v1404 = vld [vmem:[#allocation10 + $0x1d0] sm:$0xff]
    %v1405 = vld [vmem:[#allocation10 + $0x1d8] sm:$0xff]
    %v1406 = vld [vmem:[#allocation10 + $0x1e0] sm:$0xff]
    %v1407 = vld [vmem:[#allocation10 + $0x1e8] sm:$0xff]
    %v1408 = vld [vmem:[#allocation10 + $0x1f0] sm:$0xff]
    %v1409 = vld [vmem:[#allocation10 + $0x1f8] sm:$0xff]
    %1410 = vmatpush.msra.mxu0 %v1406
    %1411 = vmatpush.msra.mxu0 %v1402
    %1412 = vmatpush.msra.mxu0 %v1398
    %1413 = vmatpush.msra.mxu0 %v1394
    %1414 = vmatpush.msra.mxu0 %v1390
    %1415 = vmatpush.msra.mxu0 %v1386
    %1416 = vmatpush.msra.mxu0 %v1382
    %1417 = vmatpush.msra.mxu0 %v1378
    %1418 = vmatpush.msra.mxu0 %v1374
    %1419 = vmatpush.msra.mxu0 %v1370
    %1420 = vmatpush.msra.mxu0 %v1366
    %1421 = vmatpush.msra.mxu0 %v1362
    %1422 = vmatpush.msra.mxu0 %v1358
    %1423 = vmatpush.msra.mxu0 %v1354
    %1424 = vmatpush.msra.mxu0 %v1350
    %1425 = vmatpush.msra.mxu0 %v1346
    %1426 = vmatmul.f32.gmra.mxu0 %v1330
    %v1427 = vpop.f32.mrf.mxu0
    %v1428 = vadd.f32 0.0, %v1427
    %1429 = vmatmul.f32.gmra.mxu0 %v1331
    %v1430 = vpop.f32.mrf.mxu0
    %v1431 = vadd.f32 0.0, %v1430
    %1432 = vmatmul.f32.gmra.mxu0 %v1332
    %v1433 = vpop.f32.mrf.mxu0
    %v1434 = vadd.f32 0.0, %v1433
    %1435 = vmatmul.f32.gmra.mxu0 %v1333
    %v1436 = vpop.f32.mrf.mxu0
    %v1437 = vadd.f32 0.0, %v1436
    %1438 = vmatmul.f32.gmra.mxu0 %v1334
    %v1439 = vpop.f32.mrf.mxu0
    %v1440 = vadd.f32 0.0, %v1439
    %1441 = vmatmul.f32.gmra.mxu0 %v1335
    %v1442 = vpop.f32.mrf.mxu0
    %v1443 = vadd.f32 0.0, %v1442
    %1444 = vmatmul.f32.gmra.mxu0 %v1336
    %v1445 = vpop.f32.mrf.mxu0
    %v1446 = vadd.f32 0.0, %v1445
    %1447 = vmatmul.f32.gmra.mxu0 %v1337
    %v1448 = vpop.f32.mrf.mxu0
    %v1449 = vadd.f32 0.0, %v1448
    %1450 = vmatmul.f32.gmra.mxu0 %v1338
    %v1451 = vpop.f32.mrf.mxu0
    %v1452 = vadd.f32 0.0, %v1451
    %1453 = vmatmul.f32.gmra.mxu0 %v1339
    %v1454 = vpop.f32.mrf.mxu0
    %v1455 = vadd.f32 0.0, %v1454
    %1456 = vmatmul.f32.gmra.mxu0 %v1340
    %v1457 = vpop.f32.mrf.mxu0
    %v1458 = vadd.f32 0.0, %v1457
    %1459 = vmatmul.f32.gmra.mxu0 %v1341
    %v1460 = vpop.f32.mrf.mxu0
    %v1461 = vadd.f32 0.0, %v1460
    %1462 = vmatmul.f32.gmra.mxu0 %v1342
    %v1463 = vpop.f32.mrf.mxu0
    %v1464 = vadd.f32 0.0, %v1463
    %1465 = vmatmul.f32.gmra.mxu0 %v1343
    %v1466 = vpop.f32.mrf.mxu0
    %v1467 = vadd.f32 0.0, %v1466
    %1468 = vmatmul.f32.gmra.mxu0 %v1344
    %v1469 = vpop.f32.mrf.mxu0
    %v1470 = vadd.f32 0.0, %v1469
    %1471 = vmatmul.f32.gmra.mxu0 %v1345
    %v1472 = vpop.f32.mrf.mxu0
    %v1473 = vadd.f32 0.0, %v1472
    %1474 = vdwg.mxu0
    %1475 = vmatpush.msra.mxu0 %v1407
    %1476 = vmatpush.msra.mxu0 %v1403
    %1477 = vmatpush.msra.mxu0 %v1399
    %1478 = vmatpush.msra.mxu0 %v1395
    %1479 = vmatpush.msra.mxu0 %v1391
    %1480 = vmatpush.msra.mxu0 %v1387
    %1481 = vmatpush.msra.mxu0 %v1383
    %1482 = vmatpush.msra.mxu0 %v1379
    %1483 = vmatpush.msra.mxu0 %v1375
    %1484 = vmatpush.msra.mxu0 %v1371
    %1485 = vmatpush.msra.mxu0 %v1367
    %1486 = vmatpush.msra.mxu0 %v1363
    %1487 = vmatpush.msra.mxu0 %v1359
    %1488 = vmatpush.msra.mxu0 %v1355
    %1489 = vmatpush.msra.mxu0 %v1351
    %1490 = vmatpush.msra.mxu0 %v1347
    %1491 = vmatmul.f32.gmra.mxu0 %v1330
    %v1492 = vpop.f32.mrf.mxu0
    %v1493 = vadd.f32 0.0, %v1492
    %1494 = vmatmul.f32.gmra.mxu0 %v1331
    %v1495 = vpop.f32.mrf.mxu0
    %v1496 = vadd.f32 0.0, %v1495
    %1497 = vmatmul.f32.gmra.mxu0 %v1332
    %v1498 = vpop.f32.mrf.mxu0
    %v1499 = vadd.f32 0.0, %v1498
    %1500 = vmatmul.f32.gmra.mxu0 %v1333
    %v1501 = vpop.f32.mrf.mxu0
    %v1502 = vadd.f32 0.0, %v1501
    %1503 = vmatmul.f32.gmra.mxu0 %v1334
    %v1504 = vpop.f32.mrf.mxu0
    %v1505 = vadd.f32 0.0, %v1504
    %1506 = vmatmul.f32.gmra.mxu0 %v1335
    %v1507 = vpop.f32.mrf.mxu0
    %v1508 = vadd.f32 0.0, %v1507
    %1509 = vmatmul.f32.gmra.mxu0 %v1336
    %v1510 = vpop.f32.mrf.mxu0
    %v1511 = vadd.f32 0.0, %v1510
    %1512 = vmatmul.f32.gmra.mxu0 %v1337
    %v1513 = vpop.f32.mrf.mxu0
    %v1514 = vadd.f32 0.0, %v1513
    %1515 = vmatmul.f32.gmra.mxu0 %v1338
    %v1516 = vpop.f32.mrf.mxu0
    %v1517 = vadd.f32 0.0, %v1516
    %1518 = vmatmul.f32.gmra.mxu0 %v1339
    %v1519 = vpop.f32.mrf.mxu0
    %v1520 = vadd.f32 0.0, %v1519
    %1521 = vmatmul.f32.gmra.mxu0 %v1340
    %v1522 = vpop.f32.mrf.mxu0
    %v1523 = vadd.f32 0.0, %v1522
    %1524 = vmatmul.f32.gmra.mxu0 %v1341
    %v1525 = vpop.f32.mrf.mxu0
    %v1526 = vadd.f32 0.0, %v1525
    %1527 = vmatmul.f32.gmra.mxu0 %v1342
    %v1528 = vpop.f32.mrf.mxu0
    %v1529 = vadd.f32 0.0, %v1528
    %1530 = vmatmul.f32.gmra.mxu0 %v1343
    %v1531 = vpop.f32.mrf.mxu0
    %v1532 = vadd.f32 0.0, %v1531
    %1533 = vmatmul.f32.gmra.mxu0 %v1344
    %v1534 = vpop.f32.mrf.mxu0
    %v1535 = vadd.f32 0.0, %v1534
    %1536 = vmatmul.f32.gmra.mxu0 %v1345
    %v1537 = vpop.f32.mrf.mxu0
    %v1538 = vadd.f32 0.0, %v1537
    %1539 = vdwg.mxu0
    %1540 = vmatpush.msra.mxu0 %v1408
    %1541 = vmatpush.msra.mxu0 %v1404
    %1542 = vmatpush.msra.mxu0 %v1400
    %1543 = vmatpush.msra.mxu0 %v1396
    %1544 = vmatpush.msra.mxu0 %v1392
    %1545 = vmatpush.msra.mxu0 %v1388
    %1546 = vmatpush.msra.mxu0 %v1384
    %1547 = vmatpush.msra.mxu0 %v1380
    %1548 = vmatpush.msra.mxu0 %v1376
    %1549 = vmatpush.msra.mxu0 %v1372
    %1550 = vmatpush.msra.mxu0 %v1368
    %1551 = vmatpush.msra.mxu0 %v1364
    %1552 = vmatpush.msra.mxu0 %v1360
    %1553 = vmatpush.msra.mxu0 %v1356
    %1554 = vmatpush.msra.mxu0 %v1352
    %1555 = vmatpush.msra.mxu0 %v1348
    %1556 = vmatmul.f32.gmra.mxu0 %v1330
    %v1557 = vpop.f32.mrf.mxu0
    %v1558 = vadd.f32 0.0, %v1557
    %1559 = vmatmul.f32.gmra.mxu0 %v1331
    %v1560 = vpop.f32.mrf.mxu0
    %v1561 = vadd.f32 0.0, %v1560
    %1562 = vmatmul.f32.gmra.mxu0 %v1332
    %v1563 = vpop.f32.mrf.mxu0
    %v1564 = vadd.f32 0.0, %v1563
    %1565 = vmatmul.f32.gmra.mxu0 %v1333
    %v1566 = vpop.f32.mrf.mxu0
    %v1567 = vadd.f32 0.0, %v1566
    %1568 = vmatmul.f32.gmra.mxu0 %v1334
    %v1569 = vpop.f32.mrf.mxu0
    %v1570 = vadd.f32 0.0, %v1569
    %1571 = vmatmul.f32.gmra.mxu0 %v1335
    %v1572 = vpop.f32.mrf.mxu0
    %v1573 = vadd.f32 0.0, %v1572
    %1574 = vmatmul.f32.gmra.mxu0 %v1336
    %v1575 = vpop.f32.mrf.mxu0
    %v1576 = vadd.f32 0.0, %v1575
    %1577 = vmatmul.f32.gmra.mxu0 %v1337
    %v1578 = vpop.f32.mrf.mxu0
    %v1579 = vadd.f32 0.0, %v1578
    %1580 = vmatmul.f32.gmra.mxu0 %v1338
    %v1581 = vpop.f32.mrf.mxu0
    %v1582 = vadd.f32 0.0, %v1581
    %1583 = vmatmul.f32.gmra.mxu0 %v1339
    %v1584 = vpop.f32.mrf.mxu0
    %v1585 = vadd.f32 0.0, %v1584
    %1586 = vmatmul.f32.gmra.mxu0 %v1340
    %v1587 = vpop.f32.mrf.mxu0
    %v1588 = vadd.f32 0.0, %v1587
    %1589 = vmatmul.f32.gmra.mxu0 %v1341
    %v1590 = vpop.f32.mrf.mxu0
    %v1591 = vadd.f32 0.0, %v1590
    %1592 = vmatmul.f32.gmra.mxu0 %v1342
    %v1593 = vpop.f32.mrf.mxu0
    %v1594 = vadd.f32 0.0, %v1593
    %1595 = vmatmul.f32.gmra.mxu0 %v1343
    %v1596 = vpop.f32.mrf.mxu0
    %v1597 = vadd.f32 0.0, %v1596
    %1598 = vmatmul.f32.gmra.mxu0 %v1344
    %v1599 = vpop.f32.mrf.mxu0
    %v1600 = vadd.f32 0.0, %v1599
    %1601 = vmatmul.f32.gmra.mxu0 %v1345
    %v1602 = vpop.f32.mrf.mxu0
    %v1603 = vadd.f32 0.0, %v1602
    %1604 = vdwg.mxu0
    %1605 = vmatpush.msra.mxu0 %v1409
    %1606 = vmatpush.msra.mxu0 %v1405
    %1607 = vmatpush.msra.mxu0 %v1401
    %1608 = vmatpush.msra.mxu0 %v1397
    %1609 = vmatpush.msra.mxu0 %v1393
    %1610 = vmatpush.msra.mxu0 %v1389
    %1611 = vmatpush.msra.mxu0 %v1385
    %1612 = vmatpush.msra.mxu0 %v1381
    %1613 = vmatpush.msra.mxu0 %v1377
    %1614 = vmatpush.msra.mxu0 %v1373
    %1615 = vmatpush.msra.mxu0 %v1369
    %1616 = vmatpush.msra.mxu0 %v1365
    %1617 = vmatpush.msra.mxu0 %v1361
    %1618 = vmatpush.msra.mxu0 %v1357
    %1619 = vmatpush.msra.mxu0 %v1353
    %1620 = vmatpush.msra.mxu0 %v1349
    %1621 = vmatmul.f32.gmra.mxu0 %v1330
    %v1622 = vpop.f32.mrf.mxu0
    %v1623 = vadd.f32 0.0, %v1622
    %1624 = vmatmul.f32.gmra.mxu0 %v1331
    %v1625 = vpop.f32.mrf.mxu0
    %v1626 = vadd.f32 0.0, %v1625
    %1627 = vmatmul.f32.gmra.mxu0 %v1332
    %v1628 = vpop.f32.mrf.mxu0
    %v1629 = vadd.f32 0.0, %v1628
    %1630 = vmatmul.f32.gmra.mxu0 %v1333
    %v1631 = vpop.f32.mrf.mxu0
    %v1632 = vadd.f32 0.0, %v1631
    %1633 = vmatmul.f32.gmra.mxu0 %v1334
    %v1634 = vpop.f32.mrf.mxu0
    %v1635 = vadd.f32 0.0, %v1634
    %1636 = vmatmul.f32.gmra.mxu0 %v1335
    %v1637 = vpop.f32.mrf.mxu0
    %v1638 = vadd.f32 0.0, %v1637
    %1639 = vmatmul.f32.gmra.mxu0 %v1336
    %v1640 = vpop.f32.mrf.mxu0
    %v1641 = vadd.f32 0.0, %v1640
    %1642 = vmatmul.f32.gmra.mxu0 %v1337
    %v1643 = vpop.f32.mrf.mxu0
    %v1644 = vadd.f32 0.0, %v1643
    %1645 = vmatmul.f32.gmra.mxu0 %v1338
    %v1646 = vpop.f32.mrf.mxu0
    %v1647 = vadd.f32 0.0, %v1646
    %1648 = vmatmul.f32.gmra.mxu0 %v1339
    %v1649 = vpop.f32.mrf.mxu0
    %v1650 = vadd.f32 0.0, %v1649
    %1651 = vmatmul.f32.gmra.mxu0 %v1340
    %v1652 = vpop.f32.mrf.mxu0
    %v1653 = vadd.f32 0.0, %v1652
    %1654 = vmatmul.f32.gmra.mxu0 %v1341
    %v1655 = vpop.f32.mrf.mxu0
    %v1656 = vadd.f32 0.0, %v1655
    %1657 = vmatmul.f32.gmra.mxu0 %v1342
    %v1658 = vpop.f32.mrf.mxu0
    %v1659 = vadd.f32 0.0, %v1658
    %1660 = vmatmul.f32.gmra.mxu0 %v1343
    %v1661 = vpop.f32.mrf.mxu0
    %v1662 = vadd.f32 0.0, %v1661
    %1663 = vmatmul.f32.gmra.mxu0 %v1344
    %v1664 = vpop.f32.mrf.mxu0
    %v1665 = vadd.f32 0.0, %v1664
    %1666 = vmatmul.f32.gmra.mxu0 %v1345
    %v1667 = vpop.f32.mrf.mxu0
    %v1668 = vadd.f32 0.0, %v1667
    %1669 = vdwg.mxu0
    %v1670 = vpack.c.bf16 %v1626, %v1623
    %v1671 = vpack.c.bf16 %v1632, %v1629
    %v1672 = vpack.c.bf16 %v1638, %v1635
    %v1673 = vpack.c.bf16 %v1644, %v1641
    %v1674 = vpack.c.bf16 %v1650, %v1647
    %v1675 = vpack.c.bf16 %v1656, %v1653
    %v1676 = vpack.c.bf16 %v1662, %v1659
    %v1677 = vpack.c.bf16 %v1668, %v1665
    %1678 = vmatpush.bf16.msra.mxu0 %v1677
    %1679 = vmatpush.bf16.msra.mxu0 %v1676
    %1680 = vmatpush.bf16.msra.mxu0 %v1675
    %1681 = vmatpush.bf16.msra.mxu0 %v1674
    %1682 = vmatpush.bf16.msra.mxu0 %v1673
    %1683 = vmatpush.bf16.msra.mxu0 %v1672
    %1684 = vmatpush.bf16.msra.mxu0 %v1671
    %1685 = vmatpush.bf16.msra.mxu0 %v1670
    %1686 = vmatmul.bf16.gmra.mxu0 %v504
    %v1687 = vpop.f32.mrf.mxu0
    %v1688 = vadd.f32 0.0, %v1687
    %v1689 = vpop.f32.mrf.mxu0
    %v1690 = vadd.f32 0.0, %v1689
    %1691 = vmatmul.bf16.gmra.mxu0 %v505
    %v1692 = vpop.f32.mrf.mxu0
    %v1693 = vadd.f32 0.0, %v1692
    %v1694 = vpop.f32.mrf.mxu0
    %v1695 = vadd.f32 0.0, %v1694
    %1696 = vmatmul.bf16.gmra.mxu0 %v506
    %v1697 = vpop.f32.mrf.mxu0
    %v1698 = vadd.f32 0.0, %v1697
    %v1699 = vpop.f32.mrf.mxu0
    %v1700 = vadd.f32 0.0, %v1699
    %1701 = vmatmul.bf16.gmra.mxu0 %v507
    %v1702 = vpop.f32.mrf.mxu0
    %v1703 = vadd.f32 0.0, %v1702
    %v1704 = vpop.f32.mrf.mxu0
    %v1705 = vadd.f32 0.0, %v1704
    %1706 = vmatmul.bf16.gmra.mxu0 %v508
    %v1707 = vpop.f32.mrf.mxu0
    %v1708 = vadd.f32 0.0, %v1707
    %v1709 = vpop.f32.mrf.mxu0
    %v1710 = vadd.f32 0.0, %v1709
    %1711 = vmatmul.bf16.gmra.mxu0 %v509
    %v1712 = vpop.f32.mrf.mxu0
    %v1713 = vadd.f32 0.0, %v1712
    %v1714 = vpop.f32.mrf.mxu0
    %v1715 = vadd.f32 0.0, %v1714
    %1716 = vmatmul.bf16.gmra.mxu0 %v510
    %v1717 = vpop.f32.mrf.mxu0
    %v1718 = vadd.f32 0.0, %v1717
    %v1719 = vpop.f32.mrf.mxu0
    %v1720 = vadd.f32 0.0, %v1719
    %1721 = vmatmul.bf16.gmra.mxu0 %v511
    %v1722 = vpop.f32.mrf.mxu0
    %v1723 = vadd.f32 0.0, %v1722
    %v1724 = vpop.f32.mrf.mxu0
    %v1725 = vadd.f32 0.0, %v1724
    %1726 = vdwg.mxu0
    %v1727 = vadd.f32 %v1558, %v1688
    %v1728 = vadd.f32 %v1561, %v1690
    %v1729 = vadd.f32 %v1564, %v1693
    %v1730 = vadd.f32 %v1567, %v1695
    %v1731 = vadd.f32 %v1570, %v1698
    %v1732 = vadd.f32 %v1573, %v1700
    %v1733 = vadd.f32 %v1576, %v1703
    %v1734 = vadd.f32 %v1579, %v1705
    %v1735 = vadd.f32 %v1582, %v1708
    %v1736 = vadd.f32 %v1585, %v1710
    %v1737 = vadd.f32 %v1588, %v1713
    %v1738 = vadd.f32 %v1591, %v1715
    %v1739 = vadd.f32 %v1594, %v1718
    %v1740 = vadd.f32 %v1597, %v1720
    %v1741 = vadd.f32 %v1600, %v1723
    %v1742 = vadd.f32 %v1603, %v1725
    %v1743 = vpack.c.bf16 %v1728, %v1727
    %v1744 = vpack.c.bf16 %v1730, %v1729
    %v1745 = vpack.c.bf16 %v1732, %v1731
    %v1746 = vpack.c.bf16 %v1734, %v1733
    %v1747 = vpack.c.bf16 %v1736, %v1735
    %v1748 = vpack.c.bf16 %v1738, %v1737
    %v1749 = vpack.c.bf16 %v1740, %v1739
    %v1750 = vpack.c.bf16 %v1742, %v1741
    %1751 = vmatpush.bf16.msra.mxu0 %v1750
    %1752 = vmatpush.bf16.msra.mxu0 %v1749
    %1753 = vmatpush.bf16.msra.mxu0 %v1748
    %1754 = vmatpush.bf16.msra.mxu0 %v1747
    %1755 = vmatpush.bf16.msra.mxu0 %v1746
    %1756 = vmatpush.bf16.msra.mxu0 %v1745
    %1757 = vmatpush.bf16.msra.mxu0 %v1744
    %1758 = vmatpush.bf16.msra.mxu0 %v1743
    %1759 = vmatmul.bf16.gmra.mxu0 %v504
    %v1760 = vpop.f32.mrf.mxu0
    %v1761 = vadd.f32 0.0, %v1760
    %v1762 = vpop.f32.mrf.mxu0
    %v1763 = vadd.f32 0.0, %v1762
    %1764 = vmatmul.bf16.gmra.mxu0 %v505
    %v1765 = vpop.f32.mrf.mxu0
    %v1766 = vadd.f32 0.0, %v1765
    %v1767 = vpop.f32.mrf.mxu0
    %v1768 = vadd.f32 0.0, %v1767
    %1769 = vmatmul.bf16.gmra.mxu0 %v506
    %v1770 = vpop.f32.mrf.mxu0
    %v1771 = vadd.f32 0.0, %v1770
    %v1772 = vpop.f32.mrf.mxu0
    %v1773 = vadd.f32 0.0, %v1772
    %1774 = vmatmul.bf16.gmra.mxu0 %v507
    %v1775 = vpop.f32.mrf.mxu0
    %v1776 = vadd.f32 0.0, %v1775
    %v1777 = vpop.f32.mrf.mxu0
    %v1778 = vadd.f32 0.0, %v1777
    %1779 = vmatmul.bf16.gmra.mxu0 %v508
    %v1780 = vpop.f32.mrf.mxu0
    %v1781 = vadd.f32 0.0, %v1780
    %v1782 = vpop.f32.mrf.mxu0
    %v1783 = vadd.f32 0.0, %v1782
    %1784 = vmatmul.bf16.gmra.mxu0 %v509
    %v1785 = vpop.f32.mrf.mxu0
    %v1786 = vadd.f32 0.0, %v1785
    %v1787 = vpop.f32.mrf.mxu0
    %v1788 = vadd.f32 0.0, %v1787
    %1789 = vmatmul.bf16.gmra.mxu0 %v510
    %v1790 = vpop.f32.mrf.mxu0
    %v1791 = vadd.f32 0.0, %v1790
    %v1792 = vpop.f32.mrf.mxu0
    %v1793 = vadd.f32 0.0, %v1792
    %1794 = vmatmul.bf16.gmra.mxu0 %v511
    %v1795 = vpop.f32.mrf.mxu0
    %v1796 = vadd.f32 0.0, %v1795
    %v1797 = vpop.f32.mrf.mxu0
    %v1798 = vadd.f32 0.0, %v1797
    %1799 = vdwg.mxu0
    %v1800 = vadd.f32 %v1493, %v1761
    %v1801 = vadd.f32 %v1496, %v1763
    %v1802 = vadd.f32 %v1499, %v1766
    %v1803 = vadd.f32 %v1502, %v1768
    %v1804 = vadd.f32 %v1505, %v1771
    %v1805 = vadd.f32 %v1508, %v1773
    %v1806 = vadd.f32 %v1511, %v1776
    %v1807 = vadd.f32 %v1514, %v1778
    %v1808 = vadd.f32 %v1517, %v1781
    %v1809 = vadd.f32 %v1520, %v1783
    %v1810 = vadd.f32 %v1523, %v1786
    %v1811 = vadd.f32 %v1526, %v1788
    %v1812 = vadd.f32 %v1529, %v1791
    %v1813 = vadd.f32 %v1532, %v1793
    %v1814 = vadd.f32 %v1535, %v1796
    %v1815 = vadd.f32 %v1538, %v1798
    %v1816 = vpack.c.bf16 %v1801, %v1800
    %v1817 = vpack.c.bf16 %v1803, %v1802
    %v1818 = vpack.c.bf16 %v1805, %v1804
    %v1819 = vpack.c.bf16 %v1807, %v1806
    %v1820 = vpack.c.bf16 %v1809, %v1808
    %v1821 = vpack.c.bf16 %v1811, %v1810
    %v1822 = vpack.c.bf16 %v1813, %v1812
    %v1823 = vpack.c.bf16 %v1815, %v1814
    %1824 = vmatpush.bf16.msra.mxu0 %v1823
    %1825 = vmatpush.bf16.msra.mxu0 %v1822
    %1826 = vmatpush.bf16.msra.mxu0 %v1821
    %1827 = vmatpush.bf16.msra.mxu0 %v1820
    %1828 = vmatpush.bf16.msra.mxu0 %v1819
    %1829 = vmatpush.bf16.msra.mxu0 %v1818
    %1830 = vmatpush.bf16.msra.mxu0 %v1817
    %1831 = vmatpush.bf16.msra.mxu0 %v1816
    %1832 = vmatmul.bf16.gmra.mxu0 %v504
    %v1833 = vpop.f32.mrf.mxu0
    %v1834 = vadd.f32 0.0, %v1833
    %v1835 = vpop.f32.mrf.mxu0
    %v1836 = vadd.f32 0.0, %v1835
    %1837 = vmatmul.bf16.gmra.mxu0 %v505
    %v1838 = vpop.f32.mrf.mxu0
    %v1839 = vadd.f32 0.0, %v1838
    %v1840 = vpop.f32.mrf.mxu0
    %v1841 = vadd.f32 0.0, %v1840
    %1842 = vmatmul.bf16.gmra.mxu0 %v506
    %v1843 = vpop.f32.mrf.mxu0
    %v1844 = vadd.f32 0.0, %v1843
    %v1845 = vpop.f32.mrf.mxu0
    %v1846 = vadd.f32 0.0, %v1845
    %1847 = vmatmul.bf16.gmra.mxu0 %v507
    %v1848 = vpop.f32.mrf.mxu0
    %v1849 = vadd.f32 0.0, %v1848
    %v1850 = vpop.f32.mrf.mxu0
    %v1851 = vadd.f32 0.0, %v1850
    %1852 = vmatmul.bf16.gmra.mxu0 %v508
    %v1853 = vpop.f32.mrf.mxu0
    %v1854 = vadd.f32 0.0, %v1853
    %v1855 = vpop.f32.mrf.mxu0
    %v1856 = vadd.f32 0.0, %v1855
    %1857 = vmatmul.bf16.gmra.mxu0 %v509
    %v1858 = vpop.f32.mrf.mxu0
    %v1859 = vadd.f32 0.0, %v1858
    %v1860 = vpop.f32.mrf.mxu0
    %v1861 = vadd.f32 0.0, %v1860
    %1862 = vmatmul.bf16.gmra.mxu0 %v510
    %v1863 = vpop.f32.mrf.mxu0
    %v1864 = vadd.f32 0.0, %v1863
    %v1865 = vpop.f32.mrf.mxu0
    %v1866 = vadd.f32 0.0, %v1865
    %1867 = vmatmul.bf16.gmra.mxu0 %v511
    %v1868 = vpop.f32.mrf.mxu0
    %v1869 = vadd.f32 0.0, %v1868
    %v1870 = vpop.f32.mrf.mxu0
    %v1871 = vadd.f32 0.0, %v1870
    %1872 = vdwg.mxu0
    %v1873 = vadd.f32 %v1428, %v1834
    %v1874 = vadd.f32 %v1431, %v1836
    %v1875 = vadd.f32 %v1434, %v1839
    %v1876 = vadd.f32 %v1437, %v1841
    %v1877 = vadd.f32 %v1440, %v1844
    %v1878 = vadd.f32 %v1443, %v1846
    %v1879 = vadd.f32 %v1446, %v1849
    %v1880 = vadd.f32 %v1449, %v1851
    %v1881 = vadd.f32 %v1452, %v1854
    %v1882 = vadd.f32 %v1455, %v1856
    %v1883 = vadd.f32 %v1458, %v1859
    %v1884 = vadd.f32 %v1461, %v1861
    %v1885 = vadd.f32 %v1464, %v1864
    %v1886 = vadd.f32 %v1467, %v1866
    %v1887 = vadd.f32 %v1470, %v1869
    %v1888 = vadd.f32 %v1473, %v1871
    %v1889 = vld [vmem:[%s7] sm:$0x1]
    %v1891 = vperm.slane %v1889, 0
    %v1893 = vadd.f32 %v1873, %v1891
    %v1894 = vadd.f32 %v1874, %v1891
    %v1895 = vadd.f32 %v1875, %v1891
    %v1896 = vadd.f32 %v1876, %v1891
    %v1897 = vadd.f32 %v1877, %v1891
    %v1898 = vadd.f32 %v1878, %v1891
    %v1899 = vadd.f32 %v1879, %v1891
    %v1900 = vadd.f32 %v1880, %v1891
    %v1901 = vadd.f32 %v1881, %v1891
    %v1902 = vadd.f32 %v1882, %v1891
    %v1903 = vadd.f32 %v1883, %v1891
    %v1904 = vadd.f32 %v1884, %v1891
    %v1905 = vadd.f32 %v1885, %v1891
    %v1906 = vadd.f32 %v1886, %v1891
    %v1907 = vadd.f32 %v1887, %v1891
    %v1908 = vadd.f32 %v1888, %v1891
    %v1909 = vlaneseq
    %v1910 = vand.u32 %v1909, 127
    %vm1911 = vcmp.lt.s32.totalorder %v1910, 2
    %v1912 = vsel %vm1911, %v1893, -1e+30
    %v1913 = vsel %vm1911, %v1894, -1e+30
    %v1914 = vsel %vm1911, %v1895, -1e+30
    %v1915 = vsel %vm1911, %v1896, -1e+30
    %v1916 = vsel %vm1911, %v1897, -1e+30
    %v1917 = vsel %vm1911, %v1898, -1e+30
    %v1918 = vsel %vm1911, %v1899, -1e+30
    %v1919 = vsel %vm1911, %v1900, -1e+30
    %v1920 = vsel %vm1911, %v1901, -1e+30
    %v1921 = vsel %vm1911, %v1902, -1e+30
    %v1922 = vsel %vm1911, %v1903, -1e+30
    %v1923 = vsel %vm1911, %v1904, -1e+30
    %v1924 = vsel %vm1911, %v1905, -1e+30
    %v1925 = vsel %vm1911, %v1906, -1e+30
    %v1926 = vsel %vm1911, %v1907, -1e+30
    %v1927 = vsel %vm1911, %v1908, -1e+30
    %1928 = vmax.xlane.f32.xlu0 %v1912
    %v1929 = vpop.xlane.xlu0 %1928
    %1930 = vmax.xlane.f32.xlu0 %v1913
    %v1931 = vpop.xlane.xlu0 %1930
    %1932 = vmax.xlane.f32.xlu0 %v1914
    %v1933 = vpop.xlane.xlu0 %1932
    %1934 = vmax.xlane.f32.xlu0 %v1915
    %v1935 = vpop.xlane.xlu0 %1934
    %1936 = vmax.xlane.f32.xlu0 %v1916
    %v1937 = vpop.xlane.xlu0 %1936
    %1938 = vmax.xlane.f32.xlu0 %v1917
    %v1939 = vpop.xlane.xlu0 %1938
    %1940 = vmax.xlane.f32.xlu0 %v1918
    %v1941 = vpop.xlane.xlu0 %1940
    %1942 = vmax.xlane.f32.xlu0 %v1919
    %v1943 = vpop.xlane.xlu0 %1942
    %1944 = vmax.xlane.f32.xlu0 %v1920
    %v1945 = vpop.xlane.xlu0 %1944
    %1946 = vmax.xlane.f32.xlu0 %v1921
    %v1947 = vpop.xlane.xlu0 %1946
    %1948 = vmax.xlane.f32.xlu0 %v1922
    %v1949 = vpop.xlane.xlu0 %1948
    %1950 = vmax.xlane.f32.xlu0 %v1923
    %v1951 = vpop.xlane.xlu0 %1950
    %1952 = vmax.xlane.f32.xlu0 %v1924
    %v1953 = vpop.xlane.xlu0 %1952
    %1954 = vmax.xlane.f32.xlu0 %v1925
    %v1955 = vpop.xlane.xlu0 %1954
    %1956 = vmax.xlane.f32.xlu0 %v1926
    %v1957 = vpop.xlane.xlu0 %1956
    %1958 = vmax.xlane.f32.xlu0 %v1927
    %v1959 = vpop.xlane.xlu0 %1958
    %v1960 = vsub.f32 %v1912, %v1929
    %v1961 = vsub.f32 %v1913, %v1931
    %v1962 = vsub.f32 %v1914, %v1933
    %v1963 = vsub.f32 %v1915, %v1935
    %v1964 = vsub.f32 %v1916, %v1937
    %v1965 = vsub.f32 %v1917, %v1939
    %v1966 = vsub.f32 %v1918, %v1941
    %v1967 = vsub.f32 %v1919, %v1943
    %v1968 = vsub.f32 %v1920, %v1945
    %v1969 = vsub.f32 %v1921, %v1947
    %v1970 = vsub.f32 %v1922, %v1949
    %v1971 = vsub.f32 %v1923, %v1951
    %v1972 = vsub.f32 %v1924, %v1953
    %v1973 = vsub.f32 %v1925, %v1955
    %v1974 = vsub.f32 %v1926, %v1957
    %v1975 = vsub.f32 %v1927, %v1959
    %v1976 = vmul.f32 %v1960, 1.442695
    %v1977 = vpow.pop %v1976
    %v1978 = vmul.f32 %v1961, 1.442695
    %v1979 = vpow.pop %v1978
    %v1980 = vmul.f32 %v1962, 1.442695
    %v1981 = vpow.pop %v1980
    %v1982 = vmul.f32 %v1963, 1.442695
    %v1983 = vpow.pop %v1982
    %v1984 = vmul.f32 %v1964, 1.442695
    %v1985 = vpow.pop %v1984
    %v1986 = vmul.f32 %v1965, 1.442695
    %v1987 = vpow.pop %v1986
    %v1988 = vmul.f32 %v1966, 1.442695
    %v1989 = vpow.pop %v1988
    %v1990 = vmul.f32 %v1967, 1.442695
    %v1991 = vpow.pop %v1990
    %v1992 = vmul.f32 %v1968, 1.442695
    %v1993 = vpow.pop %v1992
    %v1994 = vmul.f32 %v1969, 1.442695
    %v1995 = vpow.pop %v1994
    %v1996 = vmul.f32 %v1970, 1.442695
    %v1997 = vpow.pop %v1996
    %v1998 = vmul.f32 %v1971, 1.442695
    %v1999 = vpow.pop %v1998
    %v2000 = vmul.f32 %v1972, 1.442695
    %v2001 = vpow.pop %v2000
    %v2002 = vmul.f32 %v1973, 1.442695
    %v2003 = vpow.pop %v2002
    %v2004 = vmul.f32 %v1974, 1.442695
    %v2005 = vpow.pop %v2004
    %v2006 = vmul.f32 %v1975, 1.442695
    %v2007 = vpow.pop %v2006
    %v2008 = vsel %vm1911, %v1977, 0.0
    %v2009 = vsel %vm1911, %v1979, 0.0
    %v2010 = vsel %vm1911, %v1981, 0.0
    %v2011 = vsel %vm1911, %v1983, 0.0
    %v2012 = vsel %vm1911, %v1985, 0.0
    %v2013 = vsel %vm1911, %v1987, 0.0
    %v2014 = vsel %vm1911, %v1989, 0.0
    %v2015 = vsel %vm1911, %v1991, 0.0
    %v2016 = vsel %vm1911, %v1993, 0.0
    %v2017 = vsel %vm1911, %v1995, 0.0
    %v2018 = vsel %vm1911, %v1997, 0.0
    %v2019 = vsel %vm1911, %v1999, 0.0
    %v2020 = vsel %vm1911, %v2001, 0.0
    %v2021 = vsel %vm1911, %v2003, 0.0
    %v2022 = vsel %vm1911, %v2005, 0.0
    %v2023 = vsel %vm1911, %v2007, 0.0
    %2024 = vadd.xlane.f32.xlu0 %v2008
    %v2025 = vpop.xlane.xlu0 %2024
    %2026 = vadd.xlane.f32.xlu0 %v2009
    %v2027 = vpop.xlane.xlu0 %2026
    %2028 = vadd.xlane.f32.xlu0 %v2010
    %v2029 = vpop.xlane.xlu0 %2028
    %2030 = vadd.xlane.f32.xlu0 %v2011
    %v2031 = vpop.xlane.xlu0 %2030
    %2032 = vadd.xlane.f32.xlu0 %v2012
    %v2033 = vpop.xlane.xlu0 %2032
    %2034 = vadd.xlane.f32.xlu0 %v2013
    %v2035 = vpop.xlane.xlu0 %2034
    %2036 = vadd.xlane.f32.xlu0 %v2014
    %v2037 = vpop.xlane.xlu0 %2036
    %2038 = vadd.xlane.f32.xlu0 %v2015
    %v2039 = vpop.xlane.xlu0 %2038
    %2040 = vadd.xlane.f32.xlu0 %v2016
    %v2041 = vpop.xlane.xlu0 %2040
    %2042 = vadd.xlane.f32.xlu0 %v2017
    %v2043 = vpop.xlane.xlu0 %2042
    %2044 = vadd.xlane.f32.xlu0 %v2018
    %v2045 = vpop.xlane.xlu0 %2044
    %2046 = vadd.xlane.f32.xlu0 %v2019
    %v2047 = vpop.xlane.xlu0 %2046
    %2048 = vadd.xlane.f32.xlu0 %v2020
    %v2049 = vpop.xlane.xlu0 %2048
    %2050 = vadd.xlane.f32.xlu0 %v2021
    %v2051 = vpop.xlane.xlu0 %2050
    %2052 = vadd.xlane.f32.xlu0 %v2022
    %v2053 = vpop.xlane.xlu0 %2052
    %2054 = vadd.xlane.f32.xlu0 %v2023
    %v2055 = vpop.xlane.xlu0 %2054
    %v2056 = vlog2.pop %v2025
    %v2057 = vmul.f32 %v2056, 0.6931472
    %v2058 = vlog2.pop %v2027
    %v2059 = vmul.f32 %v2058, 0.6931472
    %v2060 = vlog2.pop %v2029
    %v2061 = vmul.f32 %v2060, 0.6931472
    %v2062 = vlog2.pop %v2031
    %v2063 = vmul.f32 %v2062, 0.6931472
    %v2064 = vlog2.pop %v2033
    %v2065 = vmul.f32 %v2064, 0.6931472
    %v2066 = vlog2.pop %v2035
    %v2067 = vmul.f32 %v2066, 0.6931472
    %v2068 = vlog2.pop %v2037
    %v2069 = vmul.f32 %v2068, 0.6931472
    %v2070 = vlog2.pop %v2039
    %v2071 = vmul.f32 %v2070, 0.6931472
    %v2072 = vlog2.pop %v2041
    %v2073 = vmul.f32 %v2072, 0.6931472
    %v2074 = vlog2.pop %v2043
    %v2075 = vmul.f32 %v2074, 0.6931472
    %v2076 = vlog2.pop %v2045
    %v2077 = vmul.f32 %v2076, 0.6931472
    %v2078 = vlog2.pop %v2047
    %v2079 = vmul.f32 %v2078, 0.6931472
    %v2080 = vlog2.pop %v2049
    %v2081 = vmul.f32 %v2080, 0.6931472
    %v2082 = vlog2.pop %v2051
    %v2083 = vmul.f32 %v2082, 0.6931472
    %v2084 = vlog2.pop %v2053
    %v2085 = vmul.f32 %v2084, 0.6931472
    %v2086 = vlog2.pop %v2055
    %v2087 = vmul.f32 %v2086, 0.6931472
    %v2088 = vsub.f32 %v1960, %v2057
    %v2089 = vsub.f32 %v1961, %v2059
    %v2090 = vsub.f32 %v1962, %v2061
    %v2091 = vsub.f32 %v1963, %v2063
    %v2092 = vsub.f32 %v1964, %v2065
    %v2093 = vsub.f32 %v1965, %v2067
    %v2094 = vsub.f32 %v1966, %v2069
    %v2095 = vsub.f32 %v1967, %v2071
    %v2096 = vsub.f32 %v1968, %v2073
    %v2097 = vsub.f32 %v1969, %v2075
    %v2098 = vsub.f32 %v1970, %v2077
    %v2099 = vsub.f32 %v1971, %v2079
    %v2100 = vsub.f32 %v1972, %v2081
    %v2101 = vsub.f32 %v1973, %v2083
    %v2102 = vsub.f32 %v1974, %v2085
    %v2103 = vsub.f32 %v1975, %v2087
    %2104 = vst [vmem:[#allocation11] sm:$0xff] %v2088
    %2105 = vst [vmem:[#allocation11 + $0x8] sm:$0xff] %v2089
    %2106 = vst [vmem:[#allocation11 + $0x10] sm:$0xff] %v2090
    %2107 = vst [vmem:[#allocation11 + $0x18] sm:$0xff] %v2091
    %2108 = vst [vmem:[#allocation11 + $0x20] sm:$0xff] %v2092
    %2109 = vst [vmem:[#allocation11 + $0x28] sm:$0xff] %v2093
    %2110 = vst [vmem:[#allocation11 + $0x30] sm:$0xff] %v2094
    %2111 = vst [vmem:[#allocation11 + $0x38] sm:$0xff] %v2095
    %2112 = vst [vmem:[#allocation11 + $0x40] sm:$0xff] %v2096
    %2113 = vst [vmem:[#allocation11 + $0x48] sm:$0xff] %v2097
    %2114 = vst [vmem:[#allocation11 + $0x50] sm:$0xff] %v2098
    %2115 = vst [vmem:[#allocation11 + $0x58] sm:$0xff] %v2099
    %2116 = vst [vmem:[#allocation11 + $0x60] sm:$0xff] %v2100
    %2117 = vst [vmem:[#allocation11 + $0x68] sm:$0xff] %v2101
    %2118 = vst [vmem:[#allocation11 + $0x70] sm:$0xff] %v2102
    %2119 = vst [vmem:[#allocation11 + $0x78] sm:$0xff] %v2103
    // Predicated region
    $region54: #{tpu_custom_call.1} parent=1 // pred_check
      _
    $region55: #{tpu_custom_call.1} parent=1 // pred_check_branch
      %2121 = sbr.rel (0) target = $region57
    $region56: #{tpu_custom_call.1} parent=1 // pred_region
      %2123 = vsyncadd [#allocation4], 0
      %s2124 = sshll.u32 [#allocation11], 4
      %s2125 = int_to_ptr.vmem [resolvable:$true] %s2124
      %s2126 = sshll.u32 %s8, 4
      %s2127 = int_to_ptr.hbm [resolvable:$true] %s2126
      %2132 = dma.vmem_to_hbm [thread:$0]  %s2125, 2048, %s2127, [#allocation4], 128, 128, 8
    $region57: #{tpu_custom_call.1} parent=1 // pred_fallthru
      _
    // Predicated region
    $region58: #{tpu_custom_call.1} parent=1 // pred_check
      _
    $region59: #{tpu_custom_call.1} parent=1 // pred_check_branch
      %2134 = sbr.rel (0) target = $region61
    $region60: #{tpu_custom_call.1} parent=1 // pred_region
      %2136 = dma.done [#allocation4], 2048
    $region61: #{tpu_custom_call.1} parent=1 // pred_fallthru
      _
    %2137 = vsyncpa [#allocation3], 1
    %2138 = vsyncpa [#allocation6], 1
    %2139 = vsyncpa [#allocation9], 1
    %2140 = vsyncpa [#allocation4], 1

</llo_original>
